<compile_context>
chip_gen: v6e
topology: v6e:2x2x1
jax: 0.10.0
libtpu: 0.0.40
codegen_flags: <defaults>
</compile_context>

<pallas_src>
import jax
import jax.numpy as jnp
from jax.experimental import pallas as pl
from jax.experimental.pallas import tpu as pltpu  # noqa: F401  (kept for completeness)

# ----------------------------- config (small, synthetic) -----------------------------
VOCAB_SIZE = 128
EMB_SIZE = 16          # electra has embedding_size != hidden_size -> embeddings_project
HIDDEN = 32
N_LAYERS = 2
N_HEADS = 2
HEAD_DIM = HIDDEN // N_HEADS
INTERMEDIATE = 64
MAX_POS = 32
TYPE_VOCAB = 2
NUM_LABELS = 2
LN_EPS = 1e-12

BATCH = 2
SEQ = 8
TOKENS = BATCH * SEQ                 # 16
SROWS = N_HEADS * BATCH * SEQ        # 32   stacked (head, batch, seq) rows

LANE = 128                           # lane-padded width of every slab

# --- activation slab (f32 [A_ROWS, LANE]) row layout ---
A_EMB = 0                            # TOKENS rows : embeddings (EMB_SIZE lanes valid)
A_MASK = A_EMB + TOKENS              # SROWS rows  : block-diag additive attention mask
A_ONEHOT = A_MASK + SROWS            # BATCH rows  : one-hot labels
A_ROWS = 56

# --- matrix-weight slab (bf16 [WM_ROWS, LANE]); each matrix zero-padded to [LANE,LANE] ---
RM_PROJ = 0
RM_CLS = RM_PROJ + LANE
RM_OUT = RM_CLS + LANE
RM_LAYER0 = RM_OUT + LANE
LAYER_MAT_ROWS = 4 * LANE            # wqkv | wo | w_ffn1 | w_ffn2
WM_ROWS = RM_LAYER0 + N_LAYERS * LAYER_MAT_ROWS        # 1408

# --- vector-param slab (f32 [WV_ROWS, LANE]) ---
RV_EMB_LN_G = 0
RV_EMB_LN_B = 1
RV_PROJ_B = 2
RV_CLS_B = 3
RV_OUT_B = 4
RV_LAYER0 = 8
LAYER_VEC_ROWS = 8                   # bqkv, bo, ln1_g, ln1_b, b_ffn1, b_ffn2, ln2_g, ln2_b
WV_ROWS = RV_LAYER0 + N_LAYERS * LAYER_VEC_ROWS        # 24

OUT_ROWS = 8


# --------------------------------- in-kernel helpers ----------------------------------
def _layernorm(x, g, b, n):
    # x: [rows, LANE] with lanes >= n exactly zero; g/b zero beyond lane n, so padded
    # lanes stay zero in the output.  Mean/variance use the true feature count n.
    inv_n = 1.0 / n
    mu = jnp.sum(x, axis=-1, keepdims=True) * inv_n
    var = jnp.maximum(jnp.sum(x * x, axis=-1, keepdims=True) * inv_n - mu * mu, 0.0)
    return (x - mu) * jax.lax.rsqrt(var + LN_EPS) * g + b


def _gelu(x):
    # TODO(synk): HF ELECTRA "gelu" is the exact erf formulation; tanh approximation used.
    return jax.nn.gelu(x, approximate=True)


def _bf16(x):
    return x.astype(jnp.bfloat16)


# ----------------------------------- fused kernel --------------------------------------
def _fused_forward_kernel(act_ref, wm_ref, wv_ref, out_ref):
    # ---- unpack activation slab (static, aligned slices of the VMEM refs) ----
    emb = act_ref[A_EMB:A_EMB + TOKENS, :]                      # [16,128] (E lanes valid)
    attn_bias = act_ref[A_MASK:A_MASK + SROWS, 0:SROWS]         # [32,32] block-diag mask
    onehot = act_ref[A_ONEHOT:A_ONEHOT + BATCH, 0:NUM_LABELS]   # [2,2]

    # ---- embedding LayerNorm + embeddings_project (E -> H) ----
    x = _layernorm(emb, wv_ref[RV_EMB_LN_G:RV_EMB_LN_G + 1, :],
                   wv_ref[RV_EMB_LN_B:RV_EMB_LN_B + 1, :], EMB_SIZE)
    h = (jnp.dot(_bf16(x), wm_ref[RM_PROJ:RM_PROJ + LANE, :],
                 preferred_element_type=jnp.float32)
         + wv_ref[RV_PROJ_B:RV_PROJ_B + 1, :])                  # [16,128] (H lanes valid)

    scale = 1.0 / (HEAD_DIM ** 0.5)

    # ---- encoder layers: unrolled, everything VMEM/vreg resident ----
    for l in range(N_LAYERS):
        mbase = RM_LAYER0 + l * LAYER_MAT_ROWS
        vbase = RV_LAYER0 + l * LAYER_VEC_ROWS
        bqkv = wv_ref[vbase + 0:vbase + 1, :]
        bo = wv_ref[vbase + 1:vbase + 2, :]
        ln1_g = wv_ref[vbase + 2:vbase + 3, :]
        ln1_b = wv_ref[vbase + 3:vbase + 4, :]
        b1 = wv_ref[vbase + 4:vbase + 5, :]
        b2 = wv_ref[vbase + 5:vbase + 6, :]
        ln2_g = wv_ref[vbase + 6:vbase + 7, :]
        ln2_b = wv_ref[vbase + 7:vbase + 8, :]

        # packed Q|K|V projection: one [16,128] @ [128,128] MXU pass
        qkv = (jnp.dot(_bf16(h), wm_ref[mbase:mbase + LANE, :],
                       preferred_element_type=jnp.float32) + bqkv)       # [16,128]
        qkv16 = _bf16(qkv)

        # stack heads along sublanes -> rows ordered (head, batch, seq): [32, HEAD_DIM]
        q_all = jnp.concatenate(
            [qkv16[:, hd * HEAD_DIM:(hd + 1) * HEAD_DIM] for hd in range(N_HEADS)], axis=0)
        k_all = jnp.concatenate(
            [qkv16[:, HIDDEN + hd * HEAD_DIM:HIDDEN + (hd + 1) * HEAD_DIM]
             for hd in range(N_HEADS)], axis=0)
        v_all = jnp.concatenate(
            [qkv16[:, 2 * HIDDEN + hd * HEAD_DIM:2 * HIDDEN + (hd + 1) * HEAD_DIM]
             for hd in range(N_HEADS)], axis=0)

        # single block-diagonal attention: one score matmul + one softmax + one PV matmul
        s = (jax.lax.dot_general(q_all, k_all, (((1,), (1,)), ((), ())),
                                 preferred_element_type=jnp.float32) * scale
             + attn_bias)                                                # [32,32]
        m = jnp.max(s, axis=-1, keepdims=True)
        p = jnp.exp(s - m)
        # TODO(synk): no guard for a fully-masked row (CLS is never masked here).
        p = p * pl.reciprocal(jnp.sum(p, axis=-1, keepdims=True), approx=True)
        ctx_all = jnp.dot(_bf16(p), v_all, preferred_element_type=jnp.float32)   # [32,16]

        # back to token rows: heads concatenated along lanes -> [16, H]
        ctx = jnp.concatenate(
            [ctx_all[hd * TOKENS:(hd + 1) * TOKENS, :] for hd in range(N_HEADS)], axis=1)

        attn_out = (jnp.dot(_bf16(ctx), wm_ref[mbase + LANE:mbase + LANE + HIDDEN, :],
                            preferred_element_type=jnp.float32) + bo)    # [16,128]
        h = _layernorm(attn_out + h, ln1_g, ln1_b, HIDDEN)

        ffn = _gelu(jnp.dot(_bf16(h), wm_ref[mbase + 2 * LANE:mbase + 3 * LANE, :],
                            preferred_element_type=jnp.float32) + b1)    # [16,128]
        ffn_out = (jnp.dot(_bf16(ffn), wm_ref[mbase + 3 * LANE:mbase + 4 * LANE, :],
                           preferred_element_type=jnp.float32) + b2)     # [16,128]
        h = _layernorm(ffn_out + h, ln2_g, ln2_b, HIDDEN)

    # ---- classification head on [CLS] (first token of each sequence) ----
    pooled = h.reshape(BATCH, SEQ, LANE)[:, 0, :]                        # [2,128]
    cls = _gelu(jnp.dot(_bf16(pooled), wm_ref[RM_CLS:RM_CLS + LANE, :],
                        preferred_element_type=jnp.float32)
                + wv_ref[RV_CLS_B:RV_CLS_B + 1, :])                      # [2,128]
    logits_pad = (jnp.dot(_bf16(cls), wm_ref[RM_OUT:RM_OUT + LANE, :],
                          preferred_element_type=jnp.float32)
                  + wv_ref[RV_OUT_B:RV_OUT_B + 1, :])                    # [2,128]
    logits = logits_pad[:, 0:NUM_LABELS]                                 # [2,2]

    # ---- cross-entropy loss (mean over batch), exact math on the tiny logits ----
    lmax = jnp.max(logits, axis=-1, keepdims=True)
    lse = jnp.log(jnp.sum(jnp.exp(logits - lmax), axis=-1, keepdims=True)) + lmax
    nll = lse - jnp.sum(onehot * logits, axis=-1, keepdims=True)         # [2,1]
    loss = jnp.sum(nll) * (1.0 / BATCH)

    # ---- single lane-dense output slab: rows 0..B-1 = logits row, row B = loss ----
    loss_row = jnp.full((1, LANE), loss, dtype=jnp.float32)
    pad_rows = jnp.zeros((OUT_ROWS - BATCH - 1, LANE), jnp.float32)
    out_ref[...] = jnp.concatenate([logits_pad, loss_row, pad_rows], axis=0)


# ------------------------------------ wrapper ------------------------------------------
def _full_spec(shape):
    return pl.BlockSpec(shape, lambda: (0,) * len(shape))


def fused_forward(act, wmat, wvec):
    return pl.pallas_call(
        _fused_forward_kernel,
        out_shape=jax.ShapeDtypeStruct((OUT_ROWS, LANE), jnp.float32),
        in_specs=[_full_spec((A_ROWS, LANE)),
                  _full_spec((WM_ROWS, LANE)),
                  _full_spec((WV_ROWS, LANE))],
        out_specs=_full_spec((OUT_ROWS, LANE)),
    )(act, wmat, wvec)


def _block_attention_bias(attention_mask):
    """Additive [SROWS, SROWS] mask for (head,batch,seq)-stacked scores: off-(b,h)-block
    and padded key positions get -1e9, valid on-block keys get 0."""
    key_bias = (1.0 - attention_mask.astype(jnp.float32)) * -1e9          # [B,S]
    col_bias = jnp.tile(key_bias.reshape(-1), (N_HEADS,))                 # [SROWS]
    grp = jnp.arange(SROWS) // SEQ                                        # (head,batch) group id
    on_block = (grp[:, None] == grp[None, :]).astype(jnp.float32)         # [32,32]
    return on_block * col_bias[None, :] + (1.0 - on_block) * -1e9


# -------------------------------- parameter creation ----------------------------------
def _pad_mat(a):
    a = jnp.asarray(a, jnp.float32)
    return jnp.pad(a, ((0, LANE - a.shape[0]), (0, LANE - a.shape[1])))


def _pad_row(v):
    v = jnp.asarray(v, jnp.float32)
    return jnp.pad(v, (0, LANE - v.shape[0])).reshape(1, LANE)


def init_params(key):
    def nxt():
        nonlocal key
        key, sub = jax.random.split(key)
        return sub

    def normal(shape):
        return 0.02 * jax.random.normal(nxt(), shape, dtype=jnp.float32)

    params = {
        "word_emb": normal((VOCAB_SIZE, EMB_SIZE)),
        "pos_emb": normal((MAX_POS, EMB_SIZE)),
        "type_emb": normal((TYPE_VOCAB, EMB_SIZE)),
    }

    # ---- matrix-weight slab (bf16): proj, cls dense, cls out, then per-layer blocks ----
    mats = [_pad_mat(normal((EMB_SIZE, HIDDEN))),        # embeddings_project
            _pad_mat(normal((HIDDEN, HIDDEN))),          # classifier dense
            _pad_mat(normal((HIDDEN, NUM_LABELS)))]      # classifier out_proj
    # ---- vector-param slab (f32): LN gains/biases and biases (zero-padded lanes) ----
    vecs = [_pad_row(jnp.ones((EMB_SIZE,))),             # emb LN gamma
            _pad_row(jnp.zeros((EMB_SIZE,))),            # emb LN beta
            _pad_row(jnp.zeros((HIDDEN,))),              # proj bias
            _pad_row(jnp.zeros((HIDDEN,))),              # cls dense bias
            _pad_row(jnp.zeros((NUM_LABELS,))),          # cls out bias
            jnp.zeros((RV_LAYER0 - 5, LANE), jnp.float32)]

    for _ in range(N_LAYERS):
        mats += [_pad_mat(normal((HIDDEN, 3 * HIDDEN))),       # packed Wq|Wk|Wv (head-major)
                 _pad_mat(normal((HIDDEN, HIDDEN))),           # attention output proj
                 _pad_mat(normal((HIDDEN, INTERMEDIATE))),     # FFN in
                 _pad_mat(normal((INTERMEDIATE, HIDDEN)))]     # FFN out
        vecs += [_pad_row(jnp.zeros((3 * HIDDEN,))),           # bqkv
                 _pad_row(jnp.zeros((HIDDEN,))),               # bo
                 _pad_row(jnp.ones((HIDDEN,))),                # ln1 gamma
                 _pad_row(jnp.zeros((HIDDEN,))),               # ln1 beta
                 _pad_row(jnp.zeros((INTERMEDIATE,))),         # ffn1 bias
                 _pad_row(jnp.zeros((HIDDEN,))),               # ffn2 bias
                 _pad_row(jnp.ones((HIDDEN,))),                # ln2 gamma
                 _pad_row(jnp.zeros((HIDDEN,)))]               # ln2 beta

    params["wmat"] = jnp.concatenate(mats, axis=0).astype(jnp.bfloat16)
    params["wvec"] = jnp.concatenate(vecs, axis=0)
    assert params["wmat"].shape == (WM_ROWS, LANE)
    assert params["wvec"].shape == (WV_ROWS, LANE)
    return params


# --------------------------------- forward (IPUModel) ---------------------------------
@jax.jit
def ipu_model_forward(params, input_ids, token_type_ids, attention_mask, labels):
    B, S = input_ids.shape

    # --- embedding gathers + per-example glue (plain JAX / XLA) ---
    word = jnp.take(params["word_emb"], input_ids, axis=0)               # [B,S,E]
    pos = params["pos_emb"][:S][None, :, :]                              # [1,S,E]
    typ = jnp.take(params["type_emb"], token_type_ids, axis=0)           # [B,S,E]
    emb = (word + pos + typ).reshape(B * S, EMB_SIZE)                    # [B*S, E]

    attn_bias = _block_attention_bias(attention_mask)                    # [32,32]
    onehot = jax.nn.one_hot(labels, NUM_LABELS, dtype=jnp.float32)       # [B, num_labels]

    # pack per-example activations into one lane-dense slab
    act = jnp.zeros((A_ROWS, LANE), jnp.float32)
    act = act.at[A_EMB:A_EMB + TOKENS, :EMB_SIZE].set(emb)
    act = act.at[A_MASK:A_MASK + SROWS, :SROWS].set(attn_bias)
    act = act.at[A_ONEHOT:A_ONEHOT + BATCH, :NUM_LABELS].set(onehot)

    out = fused_forward(act, params["wmat"], params["wvec"])
    loss = out[BATCH, 0]
    logits = out[0:BATCH, 0:NUM_LABELS]
    # poptorch.identity_loss only applies in training mode; eval mode -> pass-through.
    return loss, logits


# --------------------------------------- main ------------------------------------------
if __name__ == "__main__":
    params = init_params(jax.random.PRNGKey(0))

    k1, _ = jax.random.split(jax.random.PRNGKey(0), 2)
    input_ids = jax.random.randint(k1, (BATCH, SEQ), 0, VOCAB_SIZE, dtype=jnp.int32)
    token_type_ids = jnp.zeros((BATCH, SEQ), dtype=jnp.int32)
    attention_mask = jnp.ones((BATCH, SEQ), dtype=jnp.int32)
    attention_mask = attention_mask.at[1, SEQ - 2:].set(0)  # pad last 2 tokens of 2nd seq
    labels = jnp.array([0, 1], dtype=jnp.int32)

    loss, logits = ipu_model_forward(params, input_ids, token_type_ids,
                                     attention_mask, labels)
    jax.block_until_ready((loss, logits))

    assert logits.shape == (BATCH, NUM_LABELS)
    assert loss.shape == ()
    assert jnp.isfinite(loss) and jnp.all(jnp.isfinite(logits))
    print("KERNEL_OK")
</pallas_src>

<mosaic_0001>
module attributes {stable_mosaic.version = 11 : i64} {
  func.func @_fused_forward_kernel(%arg0: memref<56x128xf32, #tpu.memory_space<vmem>>, %arg1: memref<1408x128xbf16, #tpu.memory_space<vmem>>, %arg2: memref<24x128xf32, #tpu.memory_space<vmem>>, %arg3: memref<8x128xf32, #tpu.memory_space<vmem>>) attributes {dimension_semantics = [], scalar_prefetch = 0 : i64, scratch_operands = 0 : i64, tpu.core_type = #tpu.core_type<tc>} {
    %c0 = arith.constant 0 : index
    %c0_0 = arith.constant 0 : index
    %0 = vector.load %arg0[%c0, %c0_0] : memref<56x128xf32, #tpu.memory_space<vmem>>, vector<16x128xf32>
    %c16 = arith.constant 16 : index
    %c0_1 = arith.constant 0 : index
    %1 = vector.load %arg0[%c16, %c0_1] : memref<56x128xf32, #tpu.memory_space<vmem>>, vector<32x32xf32>
    %c48 = arith.constant 48 : index
    %c0_2 = arith.constant 0 : index
    %2 = vector.load %arg0[%c48, %c0_2] : memref<56x128xf32, #tpu.memory_space<vmem>>, vector<2x2xf32>
    %c0_3 = arith.constant 0 : index
    %c0_4 = arith.constant 0 : index
    %3 = vector.load %arg2[%c0_3, %c0_4] : memref<24x128xf32, #tpu.memory_space<vmem>>, vector<1x128xf32>
    %c1 = arith.constant 1 : index
    %c0_5 = arith.constant 0 : index
    %4 = vector.load %arg2[%c1, %c0_5] : memref<24x128xf32, #tpu.memory_space<vmem>>, vector<1x128xf32>
    %cst = arith.constant dense<0.000000e+00> : vector<16xf32>
    %5 = vector.multi_reduction <add>, %0, %cst [1] : vector<16x128xf32> to vector<16xf32>
    %6 = vector.shape_cast %5 : vector<16xf32> to vector<16x1xf32>
    %cst_6 = arith.constant 6.250000e-02 : f32
    %7 = vector.broadcast %cst_6 : f32 to vector<16x1xf32>
    %8 = arith.mulf %6, %7 : vector<16x1xf32>
    %9 = arith.mulf %0, %0 : vector<16x128xf32>
    %cst_7 = arith.constant dense<0.000000e+00> : vector<16xf32>
    %10 = vector.multi_reduction <add>, %9, %cst_7 [1] : vector<16x128xf32> to vector<16xf32>
    %11 = vector.shape_cast %10 : vector<16xf32> to vector<16x1xf32>
    %cst_8 = arith.constant 6.250000e-02 : f32
    %12 = vector.broadcast %cst_8 : f32 to vector<16x1xf32>
    %13 = arith.mulf %11, %12 : vector<16x1xf32>
    %14 = arith.mulf %8, %8 : vector<16x1xf32>
    %15 = arith.subf %13, %14 : vector<16x1xf32>
    %cst_9 = arith.constant 0.000000e+00 : f32
    %16 = vector.broadcast %cst_9 : f32 to vector<16x1xf32>
    %17 = arith.maximumf %15, %16 : vector<16x1xf32>
    %18 = vector.broadcast %8 : vector<16x1xf32> to vector<16x128xf32>
    %19 = arith.subf %0, %18 : vector<16x128xf32>
    %cst_10 = arith.constant 9.99999996E-13 : f32
    %20 = vector.broadcast %cst_10 : f32 to vector<16x1xf32>
    %21 = arith.addf %17, %20 : vector<16x1xf32>
    %22 = math.rsqrt %21 : vector<16x1xf32>
    %23 = vector.broadcast %22 : vector<16x1xf32> to vector<16x128xf32>
    %24 = arith.mulf %19, %23 : vector<16x128xf32>
    %25 = vector.broadcast %3 : vector<1x128xf32> to vector<16x128xf32>
    %26 = arith.mulf %24, %25 : vector<16x128xf32>
    %27 = vector.broadcast %4 : vector<1x128xf32> to vector<16x128xf32>
    %28 = arith.addf %26, %27 : vector<16x128xf32>
    %29 = arith.truncf %28 : vector<16x128xf32> to vector<16x128xbf16>
    %c0_11 = arith.constant 0 : index
    %c0_12 = arith.constant 0 : index
    %30 = vector.load %arg1[%c0_11, %c0_12] : memref<1408x128xbf16, #tpu.memory_space<vmem>>, vector<128x128xbf16>
    %cst_13 = arith.constant dense<0.000000e+00> : vector<16x128xf32>
    %31 = tpu.matmul %29, %30, %cst_13 {dimension_numbers = #tpu.dot_dimension_numbers<[1], [0], [0], [1], [0, 0, 1, 1], [], []>} : vector<16x128xbf16>, vector<128x128xbf16>, vector<16x128xf32> -> vector<16x128xf32>
    %c2 = arith.constant 2 : index
    %c0_14 = arith.constant 0 : index
    %32 = vector.load %arg2[%c2, %c0_14] : memref<24x128xf32, #tpu.memory_space<vmem>>, vector<1x128xf32>
    %33 = vector.broadcast %32 : vector<1x128xf32> to vector<16x128xf32>
    %34 = arith.addf %31, %33 : vector<16x128xf32>
    %c8 = arith.constant 8 : index
    %c0_15 = arith.constant 0 : index
    %35 = vector.load %arg2[%c8, %c0_15] : memref<24x128xf32, #tpu.memory_space<vmem>>, vector<1x128xf32>
    %c9 = arith.constant 9 : index
    %c0_16 = arith.constant 0 : index
    %36 = vector.load %arg2[%c9, %c0_16] : memref<24x128xf32, #tpu.memory_space<vmem>>, vector<1x128xf32>
    %c10 = arith.constant 10 : index
    %c0_17 = arith.constant 0 : index
    %37 = vector.load %arg2[%c10, %c0_17] : memref<24x128xf32, #tpu.memory_space<vmem>>, vector<1x128xf32>
    %c11 = arith.constant 11 : index
    %c0_18 = arith.constant 0 : index
    %38 = vector.load %arg2[%c11, %c0_18] : memref<24x128xf32, #tpu.memory_space<vmem>>, vector<1x128xf32>
    %c12 = arith.constant 12 : index
    %c0_19 = arith.constant 0 : index
    %39 = vector.load %arg2[%c12, %c0_19] : memref<24x128xf32, #tpu.memory_space<vmem>>, vector<1x128xf32>
    %c13 = arith.constant 13 : index
    %c0_20 = arith.constant 0 : index
    %40 = vector.load %arg2[%c13, %c0_20] : memref<24x128xf32, #tpu.memory_space<vmem>>, vector<1x128xf32>
    %c14 = arith.constant 14 : index
    %c0_21 = arith.constant 0 : index
    %41 = vector.load %arg2[%c14, %c0_21] : memref<24x128xf32, #tpu.memory_space<vmem>>, vector<1x128xf32>
    %c15 = arith.constant 15 : index
    %c0_22 = arith.constant 0 : index
    %42 = vector.load %arg2[%c15, %c0_22] : memref<24x128xf32, #tpu.memory_space<vmem>>, vector<1x128xf32>
    %43 = arith.truncf %34 : vector<16x128xf32> to vector<16x128xbf16>
    %c384 = arith.constant 384 : index
    %c0_23 = arith.constant 0 : index
    %44 = vector.load %arg1[%c384, %c0_23] : memref<1408x128xbf16, #tpu.memory_space<vmem>>, vector<128x128xbf16>
    %cst_24 = arith.constant dense<0.000000e+00> : vector<16x128xf32>
    %45 = tpu.matmul %43, %44, %cst_24 {dimension_numbers = #tpu.dot_dimension_numbers<[1], [0], [0], [1], [0, 0, 1, 1], [], []>} : vector<16x128xbf16>, vector<128x128xbf16>, vector<16x128xf32> -> vector<16x128xf32>
    %46 = vector.broadcast %35 : vector<1x128xf32> to vector<16x128xf32>
    %47 = arith.addf %45, %46 : vector<16x128xf32>
    %48 = arith.truncf %47 : vector<16x128xf32> to vector<16x128xbf16>
    %49 = vector.extract_strided_slice %48 {offsets = [0, 0], sizes = [16, 16], strides = [1, 1]} : vector<16x128xbf16> to vector<16x16xbf16>
    %50 = vector.extract_strided_slice %48 {offsets = [0, 16], sizes = [16, 16], strides = [1, 1]} : vector<16x128xbf16> to vector<16x16xbf16>
    %51 = tpu.concatenate %49, %50 in 0 : vector<16x16xbf16>, vector<16x16xbf16> -> vector<32x16xbf16>
    %52 = vector.extract_strided_slice %48 {offsets = [0, 32], sizes = [16, 16], strides = [1, 1]} : vector<16x128xbf16> to vector<16x16xbf16>
    %53 = vector.extract_strided_slice %48 {offsets = [0, 48], sizes = [16, 16], strides = [1, 1]} : vector<16x128xbf16> to vector<16x16xbf16>
    %54 = tpu.concatenate %52, %53 in 0 : vector<16x16xbf16>, vector<16x16xbf16> -> vector<32x16xbf16>
    %55 = vector.extract_strided_slice %48 {offsets = [0, 64], sizes = [16, 16], strides = [1, 1]} : vector<16x128xbf16> to vector<16x16xbf16>
    %56 = vector.extract_strided_slice %48 {offsets = [0, 80], sizes = [16, 16], strides = [1, 1]} : vector<16x128xbf16> to vector<16x16xbf16>
    %57 = tpu.concatenate %55, %56 in 0 : vector<16x16xbf16>, vector<16x16xbf16> -> vector<32x16xbf16>
    %cst_25 = arith.constant dense<0.000000e+00> : vector<32x32xf32>
    %58 = tpu.matmul %51, %54, %cst_25 {dimension_numbers = #tpu.dot_dimension_numbers<[1], [1], [0], [0], [0, 0, 1, 0], [], []>} : vector<32x16xbf16>, vector<32x16xbf16>, vector<32x32xf32> -> vector<32x32xf32>
    %cst_26 = arith.constant 2.500000e-01 : f32
    %59 = vector.broadcast %cst_26 : f32 to vector<32x32xf32>
    %60 = arith.mulf %58, %59 : vector<32x32xf32>
    %61 = arith.addf %60, %1 : vector<32x32xf32>
    %cst_27 = arith.constant dense<0xFF800000> : vector<32xf32>
    %62 = vector.multi_reduction <maximumf>, %61, %cst_27 [1] : vector<32x32xf32> to vector<32xf32>
    %63 = vector.shape_cast %62 : vector<32xf32> to vector<32x1xf32>
    %64 = vector.broadcast %63 : vector<32x1xf32> to vector<32x32xf32>
    %65 = arith.subf %61, %64 : vector<32x32xf32>
    %66 = math.exp %65 : vector<32x32xf32>
    %cst_28 = arith.constant dense<0.000000e+00> : vector<32xf32>
    %67 = vector.multi_reduction <add>, %66, %cst_28 [1] : vector<32x32xf32> to vector<32xf32>
    %68 = vector.shape_cast %67 : vector<32xf32> to vector<32x1xf32>
    %69 = tpu.reciprocal %68 {approx = true} : vector<32x1xf32> -> vector<32x1xf32>
    %70 = vector.broadcast %69 : vector<32x1xf32> to vector<32x32xf32>
    %71 = arith.mulf %66, %70 : vector<32x32xf32>
    %72 = arith.truncf %71 : vector<32x32xf32> to vector<32x32xbf16>
    %cst_29 = arith.constant dense<0.000000e+00> : vector<32x16xf32>
    %73 = tpu.matmul %72, %57, %cst_29 {dimension_numbers = #tpu.dot_dimension_numbers<[1], [0], [0], [1], [0, 0, 1, 1], [], []>} : vector<32x32xbf16>, vector<32x16xbf16>, vector<32x16xf32> -> vector<32x16xf32>
    %74 = vector.extract_strided_slice %73 {offsets = [0, 0], sizes = [16, 16], strides = [1, 1]} : vector<32x16xf32> to vector<16x16xf32>
    %75 = vector.extract_strided_slice %73 {offsets = [16, 0], sizes = [16, 16], strides = [1, 1]} : vector<32x16xf32> to vector<16x16xf32>
    %76 = tpu.concatenate %74, %75 in 1 : vector<16x16xf32>, vector<16x16xf32> -> vector<16x32xf32>
    %77 = arith.truncf %76 : vector<16x32xf32> to vector<16x32xbf16>
    %c512 = arith.constant 512 : index
    %c0_30 = arith.constant 0 : index
    %78 = vector.load %arg1[%c512, %c0_30] : memref<1408x128xbf16, #tpu.memory_space<vmem>>, vector<32x128xbf16>
    %cst_31 = arith.constant dense<0.000000e+00> : vector<16x128xf32>
    %79 = tpu.matmul %77, %78, %cst_31 {dimension_numbers = #tpu.dot_dimension_numbers<[1], [0], [0], [1], [0, 0, 1, 1], [], []>} : vector<16x32xbf16>, vector<32x128xbf16>, vector<16x128xf32> -> vector<16x128xf32>
    %80 = vector.broadcast %36 : vector<1x128xf32> to vector<16x128xf32>
    %81 = arith.addf %79, %80 : vector<16x128xf32>
    %82 = arith.addf %81, %34 : vector<16x128xf32>
    %cst_32 = arith.constant dense<0.000000e+00> : vector<16xf32>
    %83 = vector.multi_reduction <add>, %82, %cst_32 [1] : vector<16x128xf32> to vector<16xf32>
    %84 = vector.shape_cast %83 : vector<16xf32> to vector<16x1xf32>
    %cst_33 = arith.constant 3.125000e-02 : f32
    %85 = vector.broadcast %cst_33 : f32 to vector<16x1xf32>
    %86 = arith.mulf %84, %85 : vector<16x1xf32>
    %87 = arith.mulf %82, %82 : vector<16x128xf32>
    %cst_34 = arith.constant dense<0.000000e+00> : vector<16xf32>
    %88 = vector.multi_reduction <add>, %87, %cst_34 [1] : vector<16x128xf32> to vector<16xf32>
    %89 = vector.shape_cast %88 : vector<16xf32> to vector<16x1xf32>
    %cst_35 = arith.constant 3.125000e-02 : f32
    %90 = vector.broadcast %cst_35 : f32 to vector<16x1xf32>
    %91 = arith.mulf %89, %90 : vector<16x1xf32>
    %92 = arith.mulf %86, %86 : vector<16x1xf32>
    %93 = arith.subf %91, %92 : vector<16x1xf32>
    %cst_36 = arith.constant 0.000000e+00 : f32
    %94 = vector.broadcast %cst_36 : f32 to vector<16x1xf32>
    %95 = arith.maximumf %93, %94 : vector<16x1xf32>
    %96 = vector.broadcast %86 : vector<16x1xf32> to vector<16x128xf32>
    %97 = arith.subf %82, %96 : vector<16x128xf32>
    %cst_37 = arith.constant 9.99999996E-13 : f32
    %98 = vector.broadcast %cst_37 : f32 to vector<16x1xf32>
    %99 = arith.addf %95, %98 : vector<16x1xf32>
    %100 = math.rsqrt %99 : vector<16x1xf32>
    %101 = vector.broadcast %100 : vector<16x1xf32> to vector<16x128xf32>
    %102 = arith.mulf %97, %101 : vector<16x128xf32>
    %103 = vector.broadcast %37 : vector<1x128xf32> to vector<16x128xf32>
    %104 = arith.mulf %102, %103 : vector<16x128xf32>
    %105 = vector.broadcast %38 : vector<1x128xf32> to vector<16x128xf32>
    %106 = arith.addf %104, %105 : vector<16x128xf32>
    %107 = arith.truncf %106 : vector<16x128xf32> to vector<16x128xbf16>
    %c640 = arith.constant 640 : index
    %c0_38 = arith.constant 0 : index
    %108 = vector.load %arg1[%c640, %c0_38] : memref<1408x128xbf16, #tpu.memory_space<vmem>>, vector<128x128xbf16>
    %cst_39 = arith.constant dense<0.000000e+00> : vector<16x128xf32>
    %109 = tpu.matmul %107, %108, %cst_39 {dimension_numbers = #tpu.dot_dimension_numbers<[1], [0], [0], [1], [0, 0, 1, 1], [], []>} : vector<16x128xbf16>, vector<128x128xbf16>, vector<16x128xf32> -> vector<16x128xf32>
    %110 = vector.broadcast %39 : vector<1x128xf32> to vector<16x128xf32>
    %111 = arith.addf %109, %110 : vector<16x128xf32>
    %112 = arith.mulf %111, %111 : vector<16x128xf32>
    %113 = arith.mulf %111, %112 : vector<16x128xf32>
    %cst_40 = arith.constant 4.471500e-02 : f32
    %114 = vector.broadcast %cst_40 : f32 to vector<16x128xf32>
    %115 = arith.mulf %114, %113 : vector<16x128xf32>
    %116 = arith.addf %111, %115 : vector<16x128xf32>
    %cst_41 = arith.constant 0.797884583 : f32
    %117 = vector.broadcast %cst_41 : f32 to vector<16x128xf32>
    %118 = arith.mulf %117, %116 : vector<16x128xf32>
    %119 = math.tanh %118 : vector<16x128xf32>
    %cst_42 = arith.constant 1.000000e+00 : f32
    %120 = vector.broadcast %cst_42 : f32 to vector<16x128xf32>
    %121 = arith.addf %120, %119 : vector<16x128xf32>
    %cst_43 = arith.constant 5.000000e-01 : f32
    %122 = vector.broadcast %cst_43 : f32 to vector<16x128xf32>
    %123 = arith.mulf %122, %121 : vector<16x128xf32>
    %124 = arith.mulf %111, %123 : vector<16x128xf32>
    %125 = arith.truncf %124 : vector<16x128xf32> to vector<16x128xbf16>
    %c768 = arith.constant 768 : index
    %c0_44 = arith.constant 0 : index
    %126 = vector.load %arg1[%c768, %c0_44] : memref<1408x128xbf16, #tpu.memory_space<vmem>>, vector<128x128xbf16>
    %cst_45 = arith.constant dense<0.000000e+00> : vector<16x128xf32>
    %127 = tpu.matmul %125, %126, %cst_45 {dimension_numbers = #tpu.dot_dimension_numbers<[1], [0], [0], [1], [0, 0, 1, 1], [], []>} : vector<16x128xbf16>, vector<128x128xbf16>, vector<16x128xf32> -> vector<16x128xf32>
    %128 = vector.broadcast %40 : vector<1x128xf32> to vector<16x128xf32>
    %129 = arith.addf %127, %128 : vector<16x128xf32>
    %130 = arith.addf %129, %106 : vector<16x128xf32>
    %cst_46 = arith.constant dense<0.000000e+00> : vector<16xf32>
    %131 = vector.multi_reduction <add>, %130, %cst_46 [1] : vector<16x128xf32> to vector<16xf32>
    %132 = vector.shape_cast %131 : vector<16xf32> to vector<16x1xf32>
    %cst_47 = arith.constant 3.125000e-02 : f32
    %133 = vector.broadcast %cst_47 : f32 to vector<16x1xf32>
    %134 = arith.mulf %132, %133 : vector<16x1xf32>
    %135 = arith.mulf %130, %130 : vector<16x128xf32>
    %cst_48 = arith.constant dense<0.000000e+00> : vector<16xf32>
    %136 = vector.multi_reduction <add>, %135, %cst_48 [1] : vector<16x128xf32> to vector<16xf32>
    %137 = vector.shape_cast %136 : vector<16xf32> to vector<16x1xf32>
    %cst_49 = arith.constant 3.125000e-02 : f32
    %138 = vector.broadcast %cst_49 : f32 to vector<16x1xf32>
    %139 = arith.mulf %137, %138 : vector<16x1xf32>
    %140 = arith.mulf %134, %134 : vector<16x1xf32>
    %141 = arith.subf %139, %140 : vector<16x1xf32>
    %cst_50 = arith.constant 0.000000e+00 : f32
    %142 = vector.broadcast %cst_50 : f32 to vector<16x1xf32>
    %143 = arith.maximumf %141, %142 : vector<16x1xf32>
    %144 = vector.broadcast %134 : vector<16x1xf32> to vector<16x128xf32>
    %145 = arith.subf %130, %144 : vector<16x128xf32>
    %cst_51 = arith.constant 9.99999996E-13 : f32
    %146 = vector.broadcast %cst_51 : f32 to vector<16x1xf32>
    %147 = arith.addf %143, %146 : vector<16x1xf32>
    %148 = math.rsqrt %147 : vector<16x1xf32>
    %149 = vector.broadcast %148 : vector<16x1xf32> to vector<16x128xf32>
    %150 = arith.mulf %145, %149 : vector<16x128xf32>
    %151 = vector.broadcast %41 : vector<1x128xf32> to vector<16x128xf32>
    %152 = arith.mulf %150, %151 : vector<16x128xf32>
    %153 = vector.broadcast %42 : vector<1x128xf32> to vector<16x128xf32>
    %154 = arith.addf %152, %153 : vector<16x128xf32>
    %c16_52 = arith.constant 16 : index
    %c0_53 = arith.constant 0 : index
    %155 = vector.load %arg2[%c16_52, %c0_53] : memref<24x128xf32, #tpu.memory_space<vmem>>, vector<1x128xf32>
    %c17 = arith.constant 17 : index
    %c0_54 = arith.constant 0 : index
    %156 = vector.load %arg2[%c17, %c0_54] : memref<24x128xf32, #tpu.memory_space<vmem>>, vector<1x128xf32>
    %c18 = arith.constant 18 : index
    %c0_55 = arith.constant 0 : index
    %157 = vector.load %arg2[%c18, %c0_55] : memref<24x128xf32, #tpu.memory_space<vmem>>, vector<1x128xf32>
    %c19 = arith.constant 19 : index
    %c0_56 = arith.constant 0 : index
    %158 = vector.load %arg2[%c19, %c0_56] : memref<24x128xf32, #tpu.memory_space<vmem>>, vector<1x128xf32>
    %c20 = arith.constant 20 : index
    %c0_57 = arith.constant 0 : index
    %159 = vector.load %arg2[%c20, %c0_57] : memref<24x128xf32, #tpu.memory_space<vmem>>, vector<1x128xf32>
    %c21 = arith.constant 21 : index
    %c0_58 = arith.constant 0 : index
    %160 = vector.load %arg2[%c21, %c0_58] : memref<24x128xf32, #tpu.memory_space<vmem>>, vector<1x128xf32>
    %c22 = arith.constant 22 : index
    %c0_59 = arith.constant 0 : index
    %161 = vector.load %arg2[%c22, %c0_59] : memref<24x128xf32, #tpu.memory_space<vmem>>, vector<1x128xf32>
    %c23 = arith.constant 23 : index
    %c0_60 = arith.constant 0 : index
    %162 = vector.load %arg2[%c23, %c0_60] : memref<24x128xf32, #tpu.memory_space<vmem>>, vector<1x128xf32>
    %163 = arith.truncf %154 : vector<16x128xf32> to vector<16x128xbf16>
    %c896 = arith.constant 896 : index
    %c0_61 = arith.constant 0 : index
    %164 = vector.load %arg1[%c896, %c0_61] : memref<1408x128xbf16, #tpu.memory_space<vmem>>, vector<128x128xbf16>
    %cst_62 = arith.constant dense<0.000000e+00> : vector<16x128xf32>
    %165 = tpu.matmul %163, %164, %cst_62 {dimension_numbers = #tpu.dot_dimension_numbers<[1], [0], [0], [1], [0, 0, 1, 1], [], []>} : vector<16x128xbf16>, vector<128x128xbf16>, vector<16x128xf32> -> vector<16x128xf32>
    %166 = vector.broadcast %155 : vector<1x128xf32> to vector<16x128xf32>
    %167 = arith.addf %165, %166 : vector<16x128xf32>
    %168 = arith.truncf %167 : vector<16x128xf32> to vector<16x128xbf16>
    %169 = vector.extract_strided_slice %168 {offsets = [0, 0], sizes = [16, 16], strides = [1, 1]} : vector<16x128xbf16> to vector<16x16xbf16>
    %170 = vector.extract_strided_slice %168 {offsets = [0, 16], sizes = [16, 16], strides = [1, 1]} : vector<16x128xbf16> to vector<16x16xbf16>
    %171 = tpu.concatenate %169, %170 in 0 : vector<16x16xbf16>, vector<16x16xbf16> -> vector<32x16xbf16>
    %172 = vector.extract_strided_slice %168 {offsets = [0, 32], sizes = [16, 16], strides = [1, 1]} : vector<16x128xbf16> to vector<16x16xbf16>
    %173 = vector.extract_strided_slice %168 {offsets = [0, 48], sizes = [16, 16], strides = [1, 1]} : vector<16x128xbf16> to vector<16x16xbf16>
    %174 = tpu.concatenate %172, %173 in 0 : vector<16x16xbf16>, vector<16x16xbf16> -> vector<32x16xbf16>
    %175 = vector.extract_strided_slice %168 {offsets = [0, 64], sizes = [16, 16], strides = [1, 1]} : vector<16x128xbf16> to vector<16x16xbf16>
    %176 = vector.extract_strided_slice %168 {offsets = [0, 80], sizes = [16, 16], strides = [1, 1]} : vector<16x128xbf16> to vector<16x16xbf16>
    %177 = tpu.concatenate %175, %176 in 0 : vector<16x16xbf16>, vector<16x16xbf16> -> vector<32x16xbf16>
    %cst_63 = arith.constant dense<0.000000e+00> : vector<32x32xf32>
    %178 = tpu.matmul %171, %174, %cst_63 {dimension_numbers = #tpu.dot_dimension_numbers<[1], [1], [0], [0], [0, 0, 1, 0], [], []>} : vector<32x16xbf16>, vector<32x16xbf16>, vector<32x32xf32> -> vector<32x32xf32>
    %cst_64 = arith.constant 2.500000e-01 : f32
    %179 = vector.broadcast %cst_64 : f32 to vector<32x32xf32>
    %180 = arith.mulf %178, %179 : vector<32x32xf32>
    %181 = arith.addf %180, %1 : vector<32x32xf32>
    %cst_65 = arith.constant dense<0xFF800000> : vector<32xf32>
    %182 = vector.multi_reduction <maximumf>, %181, %cst_65 [1] : vector<32x32xf32> to vector<32xf32>
    %183 = vector.shape_cast %182 : vector<32xf32> to vector<32x1xf32>
    %184 = vector.broadcast %183 : vector<32x1xf32> to vector<32x32xf32>
    %185 = arith.subf %181, %184 : vector<32x32xf32>
    %186 = math.exp %185 : vector<32x32xf32>
    %cst_66 = arith.constant dense<0.000000e+00> : vector<32xf32>
    %187 = vector.multi_reduction <add>, %186, %cst_66 [1] : vector<32x32xf32> to vector<32xf32>
    %188 = vector.shape_cast %187 : vector<32xf32> to vector<32x1xf32>
    %189 = tpu.reciprocal %188 {approx = true} : vector<32x1xf32> -> vector<32x1xf32>
    %190 = vector.broadcast %189 : vector<32x1xf32> to vector<32x32xf32>
    %191 = arith.mulf %186, %190 : vector<32x32xf32>
    %192 = arith.truncf %191 : vector<32x32xf32> to vector<32x32xbf16>
    %cst_67 = arith.constant dense<0.000000e+00> : vector<32x16xf32>
    %193 = tpu.matmul %192, %177, %cst_67 {dimension_numbers = #tpu.dot_dimension_numbers<[1], [0], [0], [1], [0, 0, 1, 1], [], []>} : vector<32x32xbf16>, vector<32x16xbf16>, vector<32x16xf32> -> vector<32x16xf32>
    %194 = vector.extract_strided_slice %193 {offsets = [0, 0], sizes = [16, 16], strides = [1, 1]} : vector<32x16xf32> to vector<16x16xf32>
    %195 = vector.extract_strided_slice %193 {offsets = [16, 0], sizes = [16, 16], strides = [1, 1]} : vector<32x16xf32> to vector<16x16xf32>
    %196 = tpu.concatenate %194, %195 in 1 : vector<16x16xf32>, vector<16x16xf32> -> vector<16x32xf32>
    %197 = arith.truncf %196 : vector<16x32xf32> to vector<16x32xbf16>
    %c1024 = arith.constant 1024 : index
    %c0_68 = arith.constant 0 : index
    %198 = vector.load %arg1[%c1024, %c0_68] : memref<1408x128xbf16, #tpu.memory_space<vmem>>, vector<32x128xbf16>
    %cst_69 = arith.constant dense<0.000000e+00> : vector<16x128xf32>
    %199 = tpu.matmul %197, %198, %cst_69 {dimension_numbers = #tpu.dot_dimension_numbers<[1], [0], [0], [1], [0, 0, 1, 1], [], []>} : vector<16x32xbf16>, vector<32x128xbf16>, vector<16x128xf32> -> vector<16x128xf32>
    %200 = vector.broadcast %156 : vector<1x128xf32> to vector<16x128xf32>
    %201 = arith.addf %199, %200 : vector<16x128xf32>
    %202 = arith.addf %201, %154 : vector<16x128xf32>
    %cst_70 = arith.constant dense<0.000000e+00> : vector<16xf32>
    %203 = vector.multi_reduction <add>, %202, %cst_70 [1] : vector<16x128xf32> to vector<16xf32>
    %204 = vector.shape_cast %203 : vector<16xf32> to vector<16x1xf32>
    %cst_71 = arith.constant 3.125000e-02 : f32
    %205 = vector.broadcast %cst_71 : f32 to vector<16x1xf32>
    %206 = arith.mulf %204, %205 : vector<16x1xf32>
    %207 = arith.mulf %202, %202 : vector<16x128xf32>
    %cst_72 = arith.constant dense<0.000000e+00> : vector<16xf32>
    %208 = vector.multi_reduction <add>, %207, %cst_72 [1] : vector<16x128xf32> to vector<16xf32>
    %209 = vector.shape_cast %208 : vector<16xf32> to vector<16x1xf32>
    %cst_73 = arith.constant 3.125000e-02 : f32
    %210 = vector.broadcast %cst_73 : f32 to vector<16x1xf32>
    %211 = arith.mulf %209, %210 : vector<16x1xf32>
    %212 = arith.mulf %206, %206 : vector<16x1xf32>
    %213 = arith.subf %211, %212 : vector<16x1xf32>
    %cst_74 = arith.constant 0.000000e+00 : f32
    %214 = vector.broadcast %cst_74 : f32 to vector<16x1xf32>
    %215 = arith.maximumf %213, %214 : vector<16x1xf32>
    %216 = vector.broadcast %206 : vector<16x1xf32> to vector<16x128xf32>
    %217 = arith.subf %202, %216 : vector<16x128xf32>
    %cst_75 = arith.constant 9.99999996E-13 : f32
    %218 = vector.broadcast %cst_75 : f32 to vector<16x1xf32>
    %219 = arith.addf %215, %218 : vector<16x1xf32>
    %220 = math.rsqrt %219 : vector<16x1xf32>
    %221 = vector.broadcast %220 : vector<16x1xf32> to vector<16x128xf32>
    %222 = arith.mulf %217, %221 : vector<16x128xf32>
    %223 = vector.broadcast %157 : vector<1x128xf32> to vector<16x128xf32>
    %224 = arith.mulf %222, %223 : vector<16x128xf32>
    %225 = vector.broadcast %158 : vector<1x128xf32> to vector<16x128xf32>
    %226 = arith.addf %224, %225 : vector<16x128xf32>
    %227 = arith.truncf %226 : vector<16x128xf32> to vector<16x128xbf16>
    %c1152 = arith.constant 1152 : index
    %c0_76 = arith.constant 0 : index
    %228 = vector.load %arg1[%c1152, %c0_76] : memref<1408x128xbf16, #tpu.memory_space<vmem>>, vector<128x128xbf16>
    %cst_77 = arith.constant dense<0.000000e+00> : vector<16x128xf32>
    %229 = tpu.matmul %227, %228, %cst_77 {dimension_numbers = #tpu.dot_dimension_numbers<[1], [0], [0], [1], [0, 0, 1, 1], [], []>} : vector<16x128xbf16>, vector<128x128xbf16>, vector<16x128xf32> -> vector<16x128xf32>
    %230 = vector.broadcast %159 : vector<1x128xf32> to vector<16x128xf32>
    %231 = arith.addf %229, %230 : vector<16x128xf32>
    %232 = arith.mulf %231, %231 : vector<16x128xf32>
    %233 = arith.mulf %231, %232 : vector<16x128xf32>
    %cst_78 = arith.constant 4.471500e-02 : f32
    %234 = vector.broadcast %cst_78 : f32 to vector<16x128xf32>
    %235 = arith.mulf %234, %233 : vector<16x128xf32>
    %236 = arith.addf %231, %235 : vector<16x128xf32>
    %cst_79 = arith.constant 0.797884583 : f32
    %237 = vector.broadcast %cst_79 : f32 to vector<16x128xf32>
    %238 = arith.mulf %237, %236 : vector<16x128xf32>
    %239 = math.tanh %238 : vector<16x128xf32>
    %cst_80 = arith.constant 1.000000e+00 : f32
    %240 = vector.broadcast %cst_80 : f32 to vector<16x128xf32>
    %241 = arith.addf %240, %239 : vector<16x128xf32>
    %cst_81 = arith.constant 5.000000e-01 : f32
    %242 = vector.broadcast %cst_81 : f32 to vector<16x128xf32>
    %243 = arith.mulf %242, %241 : vector<16x128xf32>
    %244 = arith.mulf %231, %243 : vector<16x128xf32>
    %245 = arith.truncf %244 : vector<16x128xf32> to vector<16x128xbf16>
    %c1280 = arith.constant 1280 : index
    %c0_82 = arith.constant 0 : index
    %246 = vector.load %arg1[%c1280, %c0_82] : memref<1408x128xbf16, #tpu.memory_space<vmem>>, vector<128x128xbf16>
    %cst_83 = arith.constant dense<0.000000e+00> : vector<16x128xf32>
    %247 = tpu.matmul %245, %246, %cst_83 {dimension_numbers = #tpu.dot_dimension_numbers<[1], [0], [0], [1], [0, 0, 1, 1], [], []>} : vector<16x128xbf16>, vector<128x128xbf16>, vector<16x128xf32> -> vector<16x128xf32>
    %248 = vector.broadcast %160 : vector<1x128xf32> to vector<16x128xf32>
    %249 = arith.addf %247, %248 : vector<16x128xf32>
    %250 = arith.addf %249, %226 : vector<16x128xf32>
    %cst_84 = arith.constant dense<0.000000e+00> : vector<16xf32>
    %251 = vector.multi_reduction <add>, %250, %cst_84 [1] : vector<16x128xf32> to vector<16xf32>
    %252 = vector.shape_cast %251 : vector<16xf32> to vector<16x1xf32>
    %cst_85 = arith.constant 3.125000e-02 : f32
    %253 = vector.broadcast %cst_85 : f32 to vector<16x1xf32>
    %254 = arith.mulf %252, %253 : vector<16x1xf32>
    %255 = arith.mulf %250, %250 : vector<16x128xf32>
    %cst_86 = arith.constant dense<0.000000e+00> : vector<16xf32>
    %256 = vector.multi_reduction <add>, %255, %cst_86 [1] : vector<16x128xf32> to vector<16xf32>
    %257 = vector.shape_cast %256 : vector<16xf32> to vector<16x1xf32>
    %cst_87 = arith.constant 3.125000e-02 : f32
    %258 = vector.broadcast %cst_87 : f32 to vector<16x1xf32>
    %259 = arith.mulf %257, %258 : vector<16x1xf32>
    %260 = arith.mulf %254, %254 : vector<16x1xf32>
    %261 = arith.subf %259, %260 : vector<16x1xf32>
    %cst_88 = arith.constant 0.000000e+00 : f32
    %262 = vector.broadcast %cst_88 : f32 to vector<16x1xf32>
    %263 = arith.maximumf %261, %262 : vector<16x1xf32>
    %264 = vector.broadcast %254 : vector<16x1xf32> to vector<16x128xf32>
    %265 = arith.subf %250, %264 : vector<16x128xf32>
    %cst_89 = arith.constant 9.99999996E-13 : f32
    %266 = vector.broadcast %cst_89 : f32 to vector<16x1xf32>
    %267 = arith.addf %263, %266 : vector<16x1xf32>
    %268 = math.rsqrt %267 : vector<16x1xf32>
    %269 = vector.broadcast %268 : vector<16x1xf32> to vector<16x128xf32>
    %270 = arith.mulf %265, %269 : vector<16x128xf32>
    %271 = vector.broadcast %161 : vector<1x128xf32> to vector<16x128xf32>
    %272 = arith.mulf %270, %271 : vector<16x128xf32>
    %273 = vector.broadcast %162 : vector<1x128xf32> to vector<16x128xf32>
    %274 = arith.addf %272, %273 : vector<16x128xf32>
    %275 = vector.shape_cast %274 : vector<16x128xf32> to vector<2x8x128xf32>
    %276 = vector.extract_strided_slice %275 {offsets = [0, 0, 0], sizes = [2, 1, 128], strides = [1, 1, 1]} : vector<2x8x128xf32> to vector<2x1x128xf32>
    %277 = vector.shape_cast %276 : vector<2x1x128xf32> to vector<2x128xf32>
    %278 = arith.truncf %277 : vector<2x128xf32> to vector<2x128xbf16>
    %c128 = arith.constant 128 : index
    %c0_90 = arith.constant 0 : index
    %279 = vector.load %arg1[%c128, %c0_90] : memref<1408x128xbf16, #tpu.memory_space<vmem>>, vector<128x128xbf16>
    %cst_91 = arith.constant dense<0.000000e+00> : vector<2x128xf32>
    %280 = tpu.matmul %278, %279, %cst_91 {dimension_numbers = #tpu.dot_dimension_numbers<[1], [0], [0], [1], [0, 0, 1, 1], [], []>} : vector<2x128xbf16>, vector<128x128xbf16>, vector<2x128xf32> -> vector<2x128xf32>
    %c3 = arith.constant 3 : index
    %c0_92 = arith.constant 0 : index
    %281 = vector.load %arg2[%c3, %c0_92] : memref<24x128xf32, #tpu.memory_space<vmem>>, vector<1x128xf32>
    %282 = vector.broadcast %281 : vector<1x128xf32> to vector<2x128xf32>
    %283 = arith.addf %280, %282 : vector<2x128xf32>
    %284 = arith.mulf %283, %283 : vector<2x128xf32>
    %285 = arith.mulf %283, %284 : vector<2x128xf32>
    %cst_93 = arith.constant 4.471500e-02 : f32
    %286 = vector.broadcast %cst_93 : f32 to vector<2x128xf32>
    %287 = arith.mulf %286, %285 : vector<2x128xf32>
    %288 = arith.addf %283, %287 : vector<2x128xf32>
    %cst_94 = arith.constant 0.797884583 : f32
    %289 = vector.broadcast %cst_94 : f32 to vector<2x128xf32>
    %290 = arith.mulf %289, %288 : vector<2x128xf32>
    %291 = math.tanh %290 : vector<2x128xf32>
    %cst_95 = arith.constant 1.000000e+00 : f32
    %292 = vector.broadcast %cst_95 : f32 to vector<2x128xf32>
    %293 = arith.addf %292, %291 : vector<2x128xf32>
    %cst_96 = arith.constant 5.000000e-01 : f32
    %294 = vector.broadcast %cst_96 : f32 to vector<2x128xf32>
    %295 = arith.mulf %294, %293 : vector<2x128xf32>
    %296 = arith.mulf %283, %295 : vector<2x128xf32>
    %297 = arith.truncf %296 : vector<2x128xf32> to vector<2x128xbf16>
    %c256 = arith.constant 256 : index
    %c0_97 = arith.constant 0 : index
    %298 = vector.load %arg1[%c256, %c0_97] : memref<1408x128xbf16, #tpu.memory_space<vmem>>, vector<128x128xbf16>
    %cst_98 = arith.constant dense<0.000000e+00> : vector<2x128xf32>
    %299 = tpu.matmul %297, %298, %cst_98 {dimension_numbers = #tpu.dot_dimension_numbers<[1], [0], [0], [1], [0, 0, 1, 1], [], []>} : vector<2x128xbf16>, vector<128x128xbf16>, vector<2x128xf32> -> vector<2x128xf32>
    %c4 = arith.constant 4 : index
    %c0_99 = arith.constant 0 : index
    %300 = vector.load %arg2[%c4, %c0_99] : memref<24x128xf32, #tpu.memory_space<vmem>>, vector<1x128xf32>
    %301 = vector.broadcast %300 : vector<1x128xf32> to vector<2x128xf32>
    %302 = arith.addf %299, %301 : vector<2x128xf32>
    %303 = vector.extract_strided_slice %302 {offsets = [0, 0], sizes = [2, 2], strides = [1, 1]} : vector<2x128xf32> to vector<2x2xf32>
    %cst_100 = arith.constant dense<0xFF800000> : vector<2xf32>
    %304 = vector.multi_reduction <maximumf>, %303, %cst_100 [1] : vector<2x2xf32> to vector<2xf32>
    %305 = vector.shape_cast %304 : vector<2xf32> to vector<2x1xf32>
    %306 = vector.broadcast %305 : vector<2x1xf32> to vector<2x2xf32>
    %307 = arith.subf %303, %306 : vector<2x2xf32>
    %308 = math.exp %307 : vector<2x2xf32>
    %cst_101 = arith.constant dense<0.000000e+00> : vector<2xf32>
    %309 = vector.multi_reduction <add>, %308, %cst_101 [1] : vector<2x2xf32> to vector<2xf32>
    %310 = vector.shape_cast %309 : vector<2xf32> to vector<2x1xf32>
    %311 = math.log %310 : vector<2x1xf32>
    %312 = arith.addf %311, %305 : vector<2x1xf32>
    %313 = arith.mulf %2, %303 : vector<2x2xf32>
    %cst_102 = arith.constant dense<0.000000e+00> : vector<2xf32>
    %314 = vector.multi_reduction <add>, %313, %cst_102 [1] : vector<2x2xf32> to vector<2xf32>
    %315 = vector.shape_cast %314 : vector<2xf32> to vector<2x1xf32>
    %316 = arith.subf %312, %315 : vector<2x1xf32>
    %317 = vector.shape_cast %316 : vector<2x1xf32> to vector<1x2x1xf32>
    %cst_103 = arith.constant dense<0.000000e+00> : vector<1xf32>
    %318 = vector.multi_reduction <add>, %317, %cst_103 [1, 2] : vector<1x2x1xf32> to vector<1xf32>
    %319 = vector.shape_cast %318 : vector<1xf32> to vector<1x1x1xf32>
    %320 = vector.extract %319[0, 0, 0] : f32 from vector<1x1x1xf32>
    %cst_104 = arith.constant 5.000000e-01 : f32
    %321 = arith.mulf %320, %cst_104 : f32
    %322 = vector.broadcast %321 : f32 to vector<1x128xf32>
    %cst_105 = arith.constant 0.000000e+00 : f32
    %323 = vector.broadcast %cst_105 : f32 to vector<5x128xf32>
    %324 = tpu.concatenate %302, %322, %323 in 0 : vector<2x128xf32>, vector<1x128xf32>, vector<5x128xf32> -> vector<8x128xf32>
    %c0_106 = arith.constant 0 : index
    %c0_107 = arith.constant 0 : index
    %325 = vector.load %arg3[%c0_106, %c0_107] : memref<8x128xf32, #tpu.memory_space<vmem>>, vector<8x128xf32>
    tpu.vector_store %arg3[%c0_106, %c0_107], %324 {strides = array<i32>} : memref<8x128xf32, #tpu.memory_space<vmem>>, vector<8x128xf32>,
    return
  }
}

</mosaic_0001>

<llo_original>
// kernel: tile.5
$region0: #{tile.5}
  %s0 = inlined_call_operand.vmem [shape: f32[2,8], index: 0, kind: input, shape index: {}]
  %s1 = inlined_call_operand.vmem [shape: f32[16], index: 1, kind: output, shape index: {}]
  $region1: #{tile.5} parent=0
    #allocation0 [shape = 'u8[4096]{0}', space=vmem, size = 0x1000, scoped, tag = 'scoped mem for output reshape']
    #allocation1 [shape = 'u8[4096]{0}', space=vmem, size = 0x1000, scoped, tag = 'scoped mem for input reshape']
    %s3 = sshll.u32 1, 2
    %s4 = ssub.s32 %s3, 1
    %v5 = vld [vmem:[%s0] sm:%s4]
    %6 = vst [vmem:[#allocation1] sm:%s4] %v5
    %v7 = vld [vmem:[#allocation1] sm:$0x1]
    %vm8 = vcmask 64512
    %9 = vst.msk [vmem:[#allocation0] sm:$0x1] %vm8, %v7
    %s10 = scalar_lea.vmem [#allocation1], 1
    %v11 = vld [vmem:[%s10] sm:$0x1]
    %12 = vrot.lane.b32.xlu0 %v11, 8
    %v13 = vpop.permute.xlu0 %12
    %vm14 = vcmask 130112
    %15 = vst.msk [vmem:[#allocation0] sm:$0x1] %vm14, %v13
    %s17 = sshll.u32 1, 1
    %s18 = ssub.s32 %s17, 1
    %v20 = vld [vmem:[#allocation0] sm:%s18]
    %s21 = sshll.u32 1, 1
    %s22 = ssub.s32 %s21, 1
    %23 = vst [vmem:[%s1] sm:%s22] %v20

// kernel: mul.10
$region0: #{mul.10}
  %s0 = inlined_call_operand.vmem [shape: f32[2,16], index: 0, kind: input, shape index: {}]
  %s1 = inlined_call_operand.vmem [shape: f32[32], index: 1, kind: output, shape index: {}]
  $region1: #{mul.10} parent=0
    #allocation0 [shape = 'u8[4096]{0}', space=vmem, size = 0x1000, scoped, tag = 'scoped mem for output reshape']
    #allocation1 [shape = 'u8[4096]{0}', space=vmem, size = 0x1000, scoped, tag = 'scoped mem for input reshape']
    %s3 = sshll.u32 1, 2
    %s4 = ssub.s32 %s3, 1
    %v5 = vld [vmem:[%s0] sm:%s4]
    %6 = vst [vmem:[#allocation1] sm:%s4] %v5
    %v7 = vld [vmem:[#allocation1] sm:$0x1]
    %vm8 = vcmask 130048
    %9 = vst.msk [vmem:[#allocation0] sm:$0x1] %vm8, %v7
    %s10 = scalar_lea.vmem [#allocation1], 1
    %v11 = vld [vmem:[%s10] sm:$0x1]
    %12 = vrot.lane.b32.xlu0 %v11, 16
    %v13 = vpop.permute.xlu0 %12
    %vm14 = vcmask 261248
    %15 = vst.msk [vmem:[#allocation0] sm:$0x1] %vm14, %v13
    %s17 = sshll.u32 1, 1
    %s18 = ssub.s32 %s17, 1
    %v20 = vld [vmem:[#allocation0] sm:%s18]
    %s21 = sshll.u32 1, 1
    %s22 = ssub.s32 %s21, 1
    %23 = vst [vmem:[%s1] sm:%s22] %v20

// kernel: tile.6
$region0: #{tile.6}
  #allocation0 [shape = 's32[1]{0}', space=sflag, size = 0x4, scoped, tag = 'scoped memory for tile.6']
  %s0 = inlined_call_operand.vmem [shape: f32[16], index: 0, kind: input, shape index: {}]
  %s1 = inlined_call_operand.vmem [shape: f32[2,16], index: 1, kind: output, shape index: {}]
  // Predicated region
  $region2: #{tile.6} parent=0 // pred_check
    _
  $region3: #{tile.6} parent=0 // pred_check_branch
    %3 = sbr.rel (0) target = $region5
  $region4: #{tile.6} parent=0 // pred_region
    _
  $region5: #{tile.6} parent=0 // pred_fallthru
    _
  %v4 = vld [vmem:[%s0] ss:$0 sm:$0xff]
  %5 = vst [vmem:[%s1] sm:$0x3] %v4

// kernel: ipu_model_forward.1
$region0: #{ipu_model_forward.1}
  #allocation0 [shape = 'u32[]', space=smem, size = 0x4, offset = 0x4, fixed_abs, tag = 'smem constant byte address 0x4 - core index']
  #allocation1 [shape = 'u32[144,128]{1,0:T(1,128)}', space=vmem, size = 0x12000, scoped, tag = 'internal scratch']
  %s0 = inlined_call_operand.vmem [shape: f32[56,128], index: 0, kind: input, shape index: {}]
  %s1 = inlined_call_operand.vmem [shape: bf16[1408,128], index: 1, kind: input, shape index: {}]
  %s2 = inlined_call_operand.vmem [shape: f32[24,128], index: 2, kind: input, shape index: {}]
  %s3 = inlined_call_operand.vmem [shape: f32[8,128], index: 3, kind: output, shape index: {}]
  %s4 = sld [smem:[#allocation0]]
  $region22: #{ipu_model_forward.1} parent=0
    _
  %s6 = ssub.s32 1, %s4
  %s7 = scalar_select 0, %s6, %s4
  // Predicated region
  $region2: #{ipu_model_forward.1} parent=0 // pred_check
    _
  $region3: #{ipu_model_forward.1} parent=0 // pred_check_branch
    %9 = sbr.rel (0) target = $region5
  $region4: #{ipu_model_forward.1} parent=0 // pred_region
    _
  $region5: #{ipu_model_forward.1} parent=0 // pred_fallthru
    _
  // Predicated region
  $region6: #{ipu_model_forward.1} parent=0 // pred_check
    _
  $region7: #{ipu_model_forward.1} parent=0 // pred_check_branch
    %11 = sbr.rel (0) target = $region9
  $region8: #{ipu_model_forward.1} parent=0 // pred_region
    _
  $region9: #{ipu_model_forward.1} parent=0 // pred_fallthru
    _
  // Predicated region
  $region10: #{ipu_model_forward.1} parent=0 // pred_check
    _
  $region11: #{ipu_model_forward.1} parent=0 // pred_check_branch
    %13 = sbr.rel (0) target = $region13
  $region12: #{ipu_model_forward.1} parent=0 // pred_region
    _
  $region13: #{ipu_model_forward.1} parent=0 // pred_fallthru
    _
  %v15 = vld [vmem:[%s0] sm:$0xff]
  %v16 = vld [vmem:[%s0 + $0x8] sm:$0xff]
  %v17 = vld [vmem:[%s0 + $0x10] sm:$0xff]
  %v18 = vld [vmem:[%s0 + $0x18] sm:$0xff]
  %v19 = vld [vmem:[%s0 + $0x20] sm:$0xff]
  %v20 = vld [vmem:[%s0 + $0x28] sm:$0xff]
  %v21 = vld [vmem:[%s0 + $0x30] sm:$0x3]
  %v22 = vld [vmem:[%s2] sm:$0x1]
  %v23 = vld [vmem:[%s2 + $0x1] sm:$0x1]
  %24 = vadd.xlane.f32.xlu0 %v15
  %v25 = vpop.xlane.xlu0 %24
  %26 = vadd.xlane.f32.xlu0 %v16
  %v27 = vpop.xlane.xlu0 %26
  %v28 = vmul.f32 %v25, 0.0625
  %v29 = vmul.f32 %v27, 0.0625
  %v30 = vmul.f32 %v15, %v15
  %v31 = vmul.f32 %v16, %v16
  %32 = vadd.xlane.f32.xlu0 %v30
  %v33 = vpop.xlane.xlu0 %32
  %34 = vadd.xlane.f32.xlu0 %v31
  %v35 = vpop.xlane.xlu0 %34
  %v36 = vmul.f32 %v33, 0.0625
  %v37 = vmul.f32 %v35, 0.0625
  %v38 = vmul.f32 %v28, %v28
  %v39 = vmul.f32 %v29, %v29
  %v40 = vsub.f32 %v36, %v38
  %v41 = vsub.f32 %v37, %v39
  %v42 = vmax.f32 %v40, 0.0
  %v43 = vmax.f32 %v41, 0.0
  %v44 = vsub.f32 %v15, %v28
  %v45 = vsub.f32 %v16, %v29
  %v46 = vadd.f32 %v42, 1e-12
  %v47 = vadd.f32 %v43, 1e-12
  %v48 = vrsqrt.pop %v46
  %v49 = vrsqrt.pop %v47
  %v50 = vmul.f32 %v44, %v48
  %v51 = vmul.f32 %v45, %v49
  %v52 = vlaneseq
  %v53 = vshrl.u32 %v52, 7
  %v54 = vsub.s32 0, %v53
  %v55 = vrot.slane %v22, %v54
  %v56 = vmul.f32 %v50, %v55
  %v57 = vmul.f32 %v51, %v55
  %v58 = vlaneseq
  %v59 = vshrl.u32 %v58, 7
  %v60 = vsub.s32 0, %v59
  %v61 = vrot.slane %v23, %v60
  %v62 = vadd.f32 %v56, %v61
  %v63 = vadd.f32 %v57, %v61
  %v64 = vpack.c.bf16 %v63, %v62
  %v65 = vld [vmem:[%s1] sm:$0xf]
  %v66 = vld [vmem:[%s1 + $0x4] sm:$0xf]
  %v67 = vld [vmem:[%s1 + $0x8] sm:$0xf]
  %v68 = vld [vmem:[%s1 + $0xc] sm:$0xf]
  %v69 = vld [vmem:[%s1 + $0x10] sm:$0xf]
  %v70 = vld [vmem:[%s1 + $0x14] sm:$0xf]
  %v71 = vld [vmem:[%s1 + $0x18] sm:$0xf]
  %v72 = vld [vmem:[%s1 + $0x1c] sm:$0xf]
  %v73 = vld [vmem:[%s1 + $0x20] sm:$0xf]
  %v74 = vld [vmem:[%s1 + $0x24] sm:$0xf]
  %v75 = vld [vmem:[%s1 + $0x28] sm:$0xf]
  %v76 = vld [vmem:[%s1 + $0x2c] sm:$0xf]
  %v77 = vld [vmem:[%s1 + $0x30] sm:$0xf]
  %v78 = vld [vmem:[%s1 + $0x34] sm:$0xf]
  %v79 = vld [vmem:[%s1 + $0x38] sm:$0xf]
  %v80 = vld [vmem:[%s1 + $0x3c] sm:$0xf]
  %v81 = vld [vmem:[%s2 + $0x2] sm:$0x1]
  %v82 = vlaneseq
  %v83 = vshrl.u32 %v82, 7
  %v84 = vsub.s32 0, %v83
  %v85 = vrot.slane %v81, %v84
  %v102 = vunpack.c.l.b16 %v65
  %v103 = vunpack.c.l.b16 %v66
  %v104 = vunpack.c.l.b16 %v67
  %v105 = vunpack.c.l.b16 %v68
  %v106 = vunpack.c.l.b16 %v69
  %v107 = vunpack.c.l.b16 %v70
  %v108 = vunpack.c.l.b16 %v71
  %v109 = vunpack.c.l.b16 %v72
  %v110 = vunpack.c.l.b16 %v73
  %v111 = vunpack.c.l.b16 %v74
  %v112 = vunpack.c.l.b16 %v75
  %v113 = vunpack.c.l.b16 %v76
  %v114 = vunpack.c.l.b16 %v77
  %v115 = vunpack.c.l.b16 %v78
  %v116 = vunpack.c.l.b16 %v79
  %v117 = vunpack.c.l.b16 %v80
  %v118 = vpack.c.b16 %v103, %v102
  %v119 = vpack.c.b16 %v105, %v104
  %v120 = vpack.c.b16 %v107, %v106
  %v121 = vpack.c.b16 %v109, %v108
  %v122 = vpack.c.b16 %v111, %v110
  %v123 = vpack.c.b16 %v113, %v112
  %v124 = vpack.c.b16 %v115, %v114
  %v125 = vpack.c.b16 %v117, %v116
  %134 = vmatprep.subr.bf16.mxu0 0
  %135 = vmatpush1.bf16.msra.mxu0 %v125
  %136 = vmatprep.subr.bf16.mxu0 0
  %137 = vmatpush1.bf16.msra.mxu0 %v124
  %138 = vmatprep.subr.bf16.mxu0 0
  %139 = vmatpush1.bf16.msra.mxu0 %v123
  %140 = vmatprep.subr.bf16.mxu0 0
  %141 = vmatpush1.bf16.msra.mxu0 %v122
  %142 = vmatprep.subr.bf16.mxu0 0
  %143 = vmatpush1.bf16.msra.mxu0 %v121
  %144 = vmatprep.subr.bf16.mxu0 0
  %145 = vmatpush1.bf16.msra.mxu0 %v120
  %146 = vmatprep.subr.bf16.mxu0 0
  %147 = vmatpush1.bf16.msra.mxu0 %v119
  %148 = vmatprep.subr.bf16.mxu0 0
  %149 = vmatpush1.bf16.msra.mxu0 %v118
  %150 = vmatprep.subr.bf16.mxu0 0
  %151 = vmatpush2.bf16.msra.mxu0 0
  %152 = vmatprep.subr.bf16.mxu0 0
  %153 = vmatpush2.bf16.msra.mxu0 0
  %154 = vmatprep.subr.bf16.mxu0 0
  %155 = vmatpush2.bf16.msra.mxu0 0
  %156 = vmatprep.subr.bf16.mxu0 0
  %157 = vmatpush2.bf16.msra.mxu0 0
  %158 = vmatprep.subr.bf16.mxu0 0
  %159 = vmatpush2.bf16.msra.mxu0 0
  %160 = vmatprep.subr.bf16.mxu0 0
  %161 = vmatpush2.bf16.msra.mxu0 0
  %162 = vmatprep.subr.bf16.mxu0 0
  %163 = vmatpush2.bf16.msra.mxu0 0
  %164 = vmatprep.subr.bf16.mxu0 0
  %165 = vmatpush2.bf16.msra.mxu0 0
  %166 = vmatprep.mubr.bf16.mxu0 0
  %167 = vmatmul.mubr.bf16.gmra.mxu0 %v64
  %v168 = vpop.f32.mrf.mxu0
  %v169 = vadd.f32 %v85, %v168
  %v170 = vpop.f32.mrf.mxu0
  %v171 = vpop.f32.mrf.mxu0
  %v172 = vadd.f32 %v85, %v171
  %v173 = vpop.f32.mrf.mxu0
  %174 = vdwg.mxu0
  %v175 = vld [vmem:[%s2 + $0x8] sm:$0x1]
  %v176 = vld [vmem:[%s2 + $0x9] sm:$0x1]
  %v177 = vld [vmem:[%s2 + $0xa] sm:$0x1]
  %v178 = vld [vmem:[%s2 + $0xb] sm:$0x1]
  %v179 = vld [vmem:[%s2 + $0xc] sm:$0x1]
  %v180 = vld [vmem:[%s2 + $0xd] sm:$0x1]
  %v181 = vld [vmem:[%s2 + $0xe] sm:$0x1]
  %v182 = vld [vmem:[%s2 + $0xf] sm:$0x1]
  %v183 = vpack.c.bf16 %v172, %v169
  %v184 = vld [vmem:[%s1 + $0xc0] sm:$0xf]
  %v185 = vld [vmem:[%s1 + $0xc4] sm:$0xf]
  %v186 = vld [vmem:[%s1 + $0xc8] sm:$0xf]
  %v187 = vld [vmem:[%s1 + $0xcc] sm:$0xf]
  %v188 = vld [vmem:[%s1 + $0xd0] sm:$0xf]
  %v189 = vld [vmem:[%s1 + $0xd4] sm:$0xf]
  %v190 = vld [vmem:[%s1 + $0xd8] sm:$0xf]
  %v191 = vld [vmem:[%s1 + $0xdc] sm:$0xf]
  %v192 = vld [vmem:[%s1 + $0xe0] sm:$0xf]
  %v193 = vld [vmem:[%s1 + $0xe4] sm:$0xf]
  %v194 = vld [vmem:[%s1 + $0xe8] sm:$0xf]
  %v195 = vld [vmem:[%s1 + $0xec] sm:$0xf]
  %v196 = vld [vmem:[%s1 + $0xf0] sm:$0xf]
  %v197 = vld [vmem:[%s1 + $0xf4] sm:$0xf]
  %v198 = vld [vmem:[%s1 + $0xf8] sm:$0xf]
  %v199 = vld [vmem:[%s1 + $0xfc] sm:$0xf]
  %v200 = vlaneseq
  %v201 = vshrl.u32 %v200, 7
  %v202 = vsub.s32 0, %v201
  %v203 = vrot.slane %v175, %v202
  %v220 = vunpack.c.l.b16 %v184
  %v221 = vunpack.c.l.b16 %v185
  %v222 = vunpack.c.l.b16 %v186
  %v223 = vunpack.c.l.b16 %v187
  %v224 = vunpack.c.l.b16 %v188
  %v225 = vunpack.c.l.b16 %v189
  %v226 = vunpack.c.l.b16 %v190
  %v227 = vunpack.c.l.b16 %v191
  %v228 = vunpack.c.l.b16 %v192
  %v229 = vunpack.c.l.b16 %v193
  %v230 = vunpack.c.l.b16 %v194
  %v231 = vunpack.c.l.b16 %v195
  %v232 = vunpack.c.l.b16 %v196
  %v233 = vunpack.c.l.b16 %v197
  %v234 = vunpack.c.l.b16 %v198
  %v235 = vunpack.c.l.b16 %v199
  %v236 = vpack.c.b16 %v221, %v220
  %v237 = vpack.c.b16 %v223, %v222
  %v238 = vpack.c.b16 %v225, %v224
  %v239 = vpack.c.b16 %v227, %v226
  %v240 = vpack.c.b16 %v229, %v228
  %v241 = vpack.c.b16 %v231, %v230
  %v242 = vpack.c.b16 %v233, %v232
  %v243 = vpack.c.b16 %v235, %v234
  %252 = vmatprep.subr.bf16.mxu0 0
  %253 = vmatpush1.bf16.msra.mxu0 %v243
  %254 = vmatprep.subr.bf16.mxu0 0
  %255 = vmatpush1.bf16.msra.mxu0 %v242
  %256 = vmatprep.subr.bf16.mxu0 0
  %257 = vmatpush1.bf16.msra.mxu0 %v241
  %258 = vmatprep.subr.bf16.mxu0 0
  %259 = vmatpush1.bf16.msra.mxu0 %v240
  %260 = vmatprep.subr.bf16.mxu0 0
  %261 = vmatpush1.bf16.msra.mxu0 %v239
  %262 = vmatprep.subr.bf16.mxu0 0
  %263 = vmatpush1.bf16.msra.mxu0 %v238
  %264 = vmatprep.subr.bf16.mxu0 0
  %265 = vmatpush1.bf16.msra.mxu0 %v237
  %266 = vmatprep.subr.bf16.mxu0 0
  %267 = vmatpush1.bf16.msra.mxu0 %v236
  %268 = vmatprep.subr.bf16.mxu0 0
  %269 = vmatpush2.bf16.msra.mxu0 0
  %270 = vmatprep.subr.bf16.mxu0 0
  %271 = vmatpush2.bf16.msra.mxu0 0
  %272 = vmatprep.subr.bf16.mxu0 0
  %273 = vmatpush2.bf16.msra.mxu0 0
  %274 = vmatprep.subr.bf16.mxu0 0
  %275 = vmatpush2.bf16.msra.mxu0 0
  %276 = vmatprep.subr.bf16.mxu0 0
  %277 = vmatpush2.bf16.msra.mxu0 0
  %278 = vmatprep.subr.bf16.mxu0 0
  %279 = vmatpush2.bf16.msra.mxu0 0
  %280 = vmatprep.subr.bf16.mxu0 0
  %281 = vmatpush2.bf16.msra.mxu0 0
  %282 = vmatprep.subr.bf16.mxu0 0
  %283 = vmatpush2.bf16.msra.mxu0 0
  %284 = vmatprep.mubr.bf16.mxu0 0
  %285 = vmatmul.mubr.bf16.gmra.mxu0 %v183
  %v286 = vpop.f32.mrf.mxu0
  %v287 = vadd.f32 %v203, %v286
  %v288 = vpop.f32.mrf.mxu0
  %v289 = vpop.f32.mrf.mxu0
  %v290 = vadd.f32 %v203, %v289
  %v291 = vpop.f32.mrf.mxu0
  %292 = vdwg.mxu0
  %v293 = vpack.c.bf16 %v290, %v287
  %295 = vrot.lane.b32.xlu0 %v293, 112
  %v296 = vpop.permute.xlu0 %295
  %297 = vrot.lane.b32.xlu0 %v293, 96
  %v298 = vpop.permute.xlu0 %297
  %299 = vrot.lane.b32.xlu0 %v296, 96
  %v300 = vpop.permute.xlu0 %299
  %vm301 = vcmask 130048
  %v303 = vsel %vm301, %v293, 0
  %v306 = vsel %vm301, %v296, 0
  %v309 = vsel %vm301, %v298, 0
  %v312 = vsel %vm301, %v300, 0
  %314 = vmatprep.subr.bf16.mxu0 0
  %315 = vmatpush1.bf16.xpose.msra.mxu0 0
  %316 = vmatprep.subr.bf16.mxu0 0
  %317 = vmatpush1.bf16.xpose.msra.mxu0 0
  %318 = vmatprep.subr.bf16.mxu0 0
  %319 = vmatpush1.bf16.xpose.msra.mxu0 0
  %320 = vmatprep.subr.bf16.mxu0 0
  %321 = vmatpush1.bf16.xpose.msra.mxu0 0
  %322 = vmatprep.subr.bf16.mxu0 0
  %323 = vmatpush1.bf16.xpose.msra.mxu0 0
  %324 = vmatprep.subr.bf16.mxu0 0
  %325 = vmatpush1.bf16.xpose.msra.mxu0 0
  %326 = vmatprep.subr.bf16.mxu0 0
  %327 = vmatpush1.bf16.xpose.msra.mxu0 %v312
  %328 = vmatprep.subr.bf16.mxu0 0
  %329 = vmatpush1.bf16.xpose.msra.mxu0 %v309
  %330 = vmatprep.subr.bf16.mxu0 0
  %331 = vmatpush2.bf16.xpose.msra.mxu0 0
  %332 = vmatprep.subr.bf16.mxu0 0
  %333 = vmatpush2.bf16.xpose.msra.mxu0 0
  %334 = vmatprep.subr.bf16.mxu0 0
  %335 = vmatpush2.bf16.xpose.msra.mxu0 0
  %336 = vmatprep.subr.bf16.mxu0 0
  %337 = vmatpush2.bf16.xpose.msra.mxu0 0
  %338 = vmatprep.subr.bf16.mxu0 0
  %339 = vmatpush2.bf16.xpose.msra.mxu0 0
  %340 = vmatprep.subr.bf16.mxu0 0
  %341 = vmatpush2.bf16.xpose.msra.mxu0 0
  %342 = vmatprep.subr.bf16.mxu0 0
  %343 = vmatpush2.bf16.xpose.msra.mxu0 0
  %344 = vmatprep.subr.bf16.mxu0 0
  %345 = vmatpush2.bf16.xpose.msra.mxu0 0
  %346 = vmatprep.mubr.bf16.mxu0 0
  %347 = vmatmul.mubr.bf16.gmra.mxu0 %v303
  %v348 = vpop.f32.mrf.mxu0
  %v349 = vadd.f32 0.0, %v348
  %v350 = vpop.f32.mrf.mxu0
  %v351 = vpop.f32.mrf.mxu0
  %v352 = vadd.f32 0.0, %v351
  %v353 = vpop.f32.mrf.mxu0
  %354 = vmatprep.mubr.bf16.mxu0 0
  %355 = vmatmul.mubr.bf16.gmra.mxu0 %v306
  %v356 = vpop.f32.mrf.mxu0
  %v357 = vadd.f32 0.0, %v356
  %v358 = vpop.f32.mrf.mxu0
  %v359 = vpop.f32.mrf.mxu0
  %v360 = vadd.f32 0.0, %v359
  %v361 = vpop.f32.mrf.mxu0
  %362 = vdwg.mxu0
  %v363 = vmul.f32 %v349, 0.25
  %v364 = vmul.f32 %v352, 0.25
  %v365 = vmul.f32 %v357, 0.25
  %v366 = vmul.f32 %v360, 0.25
  %v367 = vadd.f32 %v363, %v17
  %v368 = vadd.f32 %v364, %v18
  %v369 = vadd.f32 %v365, %v19
  %v370 = vadd.f32 %v366, %v20
  %vm371 = vcmask 261120
  %v372 = vsel %vm371, %v367, -inf
  %373 = vmax.xlane.f32.xlu0 %v372
  %v374 = vpop.xlane.xlu0 %373
  %v375 = vsel %vm371, %v368, -inf
  %376 = vmax.xlane.f32.xlu0 %v375
  %v377 = vpop.xlane.xlu0 %376
  %v378 = vsel %vm371, %v369, -inf
  %379 = vmax.xlane.f32.xlu0 %v378
  %v380 = vpop.xlane.xlu0 %379
  %v381 = vsel %vm371, %v370, -inf
  %382 = vmax.xlane.f32.xlu0 %v381
  %v383 = vpop.xlane.xlu0 %382
  %v384 = vsub.f32 %v367, %v374
  %v385 = vsub.f32 %v368, %v377
  %v386 = vsub.f32 %v369, %v380
  %v387 = vsub.f32 %v370, %v383
  %v388 = vmul.f32 %v384, 1.442695
  %v389 = vpow.pop %v388
  %v390 = vmul.f32 %v385, 1.442695
  %v391 = vpow.pop %v390
  %v392 = vmul.f32 %v386, 1.442695
  %v393 = vpow.pop %v392
  %v394 = vmul.f32 %v387, 1.442695
  %v395 = vpow.pop %v394
  %v396 = vsel %vm371, %v389, 0.0
  %397 = vadd.xlane.f32.xlu0 %v396
  %v398 = vpop.xlane.xlu0 %397
  %v399 = vsel %vm371, %v391, 0.0
  %400 = vadd.xlane.f32.xlu0 %v399
  %v401 = vpop.xlane.xlu0 %400
  %v402 = vsel %vm371, %v393, 0.0
  %403 = vadd.xlane.f32.xlu0 %v402
  %v404 = vpop.xlane.xlu0 %403
  %v405 = vsel %vm371, %v395, 0.0
  %406 = vadd.xlane.f32.xlu0 %v405
  %v407 = vpop.xlane.xlu0 %406
  %v408 = vrcp.pop %v398
  %v409 = vrcp.pop %v401
  %v410 = vrcp.pop %v404
  %v411 = vrcp.pop %v407
  %v412 = vmul.f32 %v389, %v408
  %v413 = vmul.f32 %v391, %v409
  %v414 = vmul.f32 %v393, %v410
  %v415 = vmul.f32 %v395, %v411
  %v416 = vpack.c.bf16 %v413, %v412
  %v417 = vpack.c.bf16 %v415, %v414
  %418 = vrot.lane.b32.xlu0 %v293, 64
  %v419 = vpop.permute.xlu0 %418
  %420 = vrot.lane.b32.xlu0 %v296, 64
  %v421 = vpop.permute.xlu0 %420
  %v425 = vsel %vm371, %v416, 0
  %v428 = vsel %vm371, %v417, 0
  %430 = vmatprep.subr.bf16.mxu0 0
  %431 = vmatpush1.bf16.msra.mxu0 0
  %432 = vmatprep.subr.bf16.mxu0 0
  %433 = vmatpush1.bf16.msra.mxu0 0
  %434 = vmatprep.subr.bf16.mxu0 0
  %435 = vmatpush1.bf16.msra.mxu0 0
  %436 = vmatprep.subr.bf16.mxu0 0
  %437 = vmatpush1.bf16.msra.mxu0 0
  %438 = vmatprep.subr.bf16.mxu0 0
  %439 = vmatpush1.bf16.msra.mxu0 0
  %440 = vmatprep.subr.bf16.mxu0 0
  %441 = vmatpush1.bf16.msra.mxu0 0
  %442 = vmatprep.subr.bf16.mxu0 0
  %443 = vmatpush1.bf16.msra.mxu0 %v421
  %444 = vmatprep.subr.bf16.mxu0 0
  %445 = vmatpush1.bf16.msra.mxu0 %v419
  %446 = vmatprep.subr.bf16.mxu0 0
  %447 = vmatpush2.bf16.msra.mxu0 0
  %448 = vmatprep.subr.bf16.mxu0 0
  %449 = vmatpush2.bf16.msra.mxu0 0
  %450 = vmatprep.subr.bf16.mxu0 0
  %451 = vmatpush2.bf16.msra.mxu0 0
  %452 = vmatprep.subr.bf16.mxu0 0
  %453 = vmatpush2.bf16.msra.mxu0 0
  %454 = vmatprep.subr.bf16.mxu0 0
  %455 = vmatpush2.bf16.msra.mxu0 0
  %456 = vmatprep.subr.bf16.mxu0 0
  %457 = vmatpush2.bf16.msra.mxu0 0
  %458 = vmatprep.subr.bf16.mxu0 0
  %459 = vmatpush2.bf16.msra.mxu0 0
  %460 = vmatprep.subr.bf16.mxu0 0
  %461 = vmatpush2.bf16.msra.mxu0 0
  %462 = vmatprep.mubr.bf16.mxu0 0
  %463 = vmatmul.mubr.bf16.gmra.mxu0 %v425
  %v464 = vpop.f32.mrf.mxu0
  %v465 = vadd.f32 0.0, %v464
  %v466 = vpop.f32.mrf.mxu0
  %v467 = vpop.f32.mrf.mxu0
  %v468 = vadd.f32 0.0, %v467
  %v469 = vpop.f32.mrf.mxu0
  %470 = vmatprep.mubr.bf16.mxu0 0
  %471 = vmatmul.mubr.bf16.gmra.mxu0 %v428
  %v472 = vpop.f32.mrf.mxu0
  %v473 = vadd.f32 0.0, %v472
  %v474 = vpop.f32.mrf.mxu0
  %v475 = vpop.f32.mrf.mxu0
  %v476 = vadd.f32 0.0, %v475
  %v477 = vpop.f32.mrf.mxu0
  %478 = vdwg.mxu0
  %481 = vrot.lane.b32.xlu0 %v473, 16
  %v482 = vpop.permute.xlu0 %481
  %483 = vrot.lane.b32.xlu0 %v476, 16
  %v484 = vpop.permute.xlu0 %483
  %v487 = vsel %vm301, %v465, %v482
  %v488 = vsel %vm301, %v468, %v484
  %v489 = vpack.c.bf16 %v488, %v487
  %v490 = vld [vmem:[%s1 + $0x100] sm:$0xf]
  %v491 = vld [vmem:[%s1 + $0x104] sm:$0xf]
  %v492 = vld [vmem:[%s1 + $0x108] sm:$0xf]
  %v493 = vld [vmem:[%s1 + $0x10c] sm:$0xf]
  %v494 = vlaneseq
  %v495 = vshrl.u32 %v494, 7
  %v496 = vsub.s32 0, %v495
  %v497 = vrot.slane %v176, %v496
  %v502 = vunpack.c.l.b16 %v490
  %v503 = vunpack.c.l.b16 %v491
  %v504 = vunpack.c.l.b16 %v492
  %v505 = vunpack.c.l.b16 %v493
  %v506 = vpack.c.b16 %v503, %v502
  %v507 = vpack.c.b16 %v505, %v504
  %v511 = vsel %vm371, %v489, 0
  %513 = vmatprep.subr.bf16.mxu0 0
  %514 = vmatpush1.bf16.msra.mxu0 0
  %515 = vmatprep.subr.bf16.mxu0 0
  %516 = vmatpush1.bf16.msra.mxu0 0
  %517 = vmatprep.subr.bf16.mxu0 0
  %518 = vmatpush1.bf16.msra.mxu0 0
  %519 = vmatprep.subr.bf16.mxu0 0
  %520 = vmatpush1.bf16.msra.mxu0 0
  %521 = vmatprep.subr.bf16.mxu0 0
  %522 = vmatpush1.bf16.msra.mxu0 0
  %523 = vmatprep.subr.bf16.mxu0 0
  %524 = vmatpush1.bf16.msra.mxu0 0
  %525 = vmatprep.subr.bf16.mxu0 0
  %526 = vmatpush1.bf16.msra.mxu0 %v507
  %527 = vmatprep.subr.bf16.mxu0 0
  %528 = vmatpush1.bf16.msra.mxu0 %v506
  %529 = vmatprep.subr.bf16.mxu0 0
  %530 = vmatpush2.bf16.msra.mxu0 0
  %531 = vmatprep.subr.bf16.mxu0 0
  %532 = vmatpush2.bf16.msra.mxu0 0
  %533 = vmatprep.subr.bf16.mxu0 0
  %534 = vmatpush2.bf16.msra.mxu0 0
  %535 = vmatprep.subr.bf16.mxu0 0
  %536 = vmatpush2.bf16.msra.mxu0 0
  %537 = vmatprep.subr.bf16.mxu0 0
  %538 = vmatpush2.bf16.msra.mxu0 0
  %539 = vmatprep.subr.bf16.mxu0 0
  %540 = vmatpush2.bf16.msra.mxu0 0
  %541 = vmatprep.subr.bf16.mxu0 0
  %542 = vmatpush2.bf16.msra.mxu0 0
  %543 = vmatprep.subr.bf16.mxu0 0
  %544 = vmatpush2.bf16.msra.mxu0 0
  %545 = vmatprep.mubr.bf16.mxu0 0
  %546 = vmatmul.mubr.bf16.gmra.mxu0 %v511
  %v547 = vpop.f32.mrf.mxu0
  %v548 = vadd.f32 %v497, %v547
  %v549 = vpop.f32.mrf.mxu0
  %v550 = vpop.f32.mrf.mxu0
  %v551 = vadd.f32 %v497, %v550
  %v552 = vpop.f32.mrf.mxu0
  %553 = vdwg.mxu0
  %v554 = vadd.f32 %v548, %v169
  %v555 = vadd.f32 %v551, %v172
  %556 = vadd.xlane.f32.xlu0 %v554
  %v557 = vpop.xlane.xlu0 %556
  %558 = vadd.xlane.f32.xlu0 %v555
  %v559 = vpop.xlane.xlu0 %558
  %v560 = vmul.f32 %v557, 0.03125
  %v561 = vmul.f32 %v559, 0.03125
  %v562 = vmul.f32 %v554, %v554
  %v563 = vmul.f32 %v555, %v555
  %564 = vadd.xlane.f32.xlu0 %v562
  %v565 = vpop.xlane.xlu0 %564
  %566 = vadd.xlane.f32.xlu0 %v563
  %v567 = vpop.xlane.xlu0 %566
  %v568 = vmul.f32 %v565, 0.03125
  %v569 = vmul.f32 %v567, 0.03125
  %v570 = vmul.f32 %v560, %v560
  %v571 = vmul.f32 %v561, %v561
  %v572 = vsub.f32 %v568, %v570
  %v573 = vsub.f32 %v569, %v571
  %v574 = vmax.f32 %v572, 0.0
  %v575 = vmax.f32 %v573, 0.0
  %v576 = vsub.f32 %v554, %v560
  %v577 = vsub.f32 %v555, %v561
  %v578 = vadd.f32 %v574, 1e-12
  %v579 = vadd.f32 %v575, 1e-12
  %v580 = vrsqrt.pop %v578
  %v581 = vrsqrt.pop %v579
  %v582 = vmul.f32 %v576, %v580
  %v583 = vmul.f32 %v577, %v581
  %v584 = vlaneseq
  %v585 = vshrl.u32 %v584, 7
  %v586 = vsub.s32 0, %v585
  %v587 = vrot.slane %v177, %v586
  %v588 = vmul.f32 %v582, %v587
  %v589 = vmul.f32 %v583, %v587
  %v590 = vlaneseq
  %v591 = vshrl.u32 %v590, 7
  %v592 = vsub.s32 0, %v591
  %v593 = vrot.slane %v178, %v592
  %v594 = vadd.f32 %v588, %v593
  %v595 = vadd.f32 %v589, %v593
  %v596 = vpack.c.bf16 %v595, %v594
  %v597 = vld [vmem:[%s1 + $0x140] sm:$0xf]
  %v598 = vld [vmem:[%s1 + $0x144] sm:$0xf]
  %v599 = vld [vmem:[%s1 + $0x148] sm:$0xf]
  %v600 = vld [vmem:[%s1 + $0x14c] sm:$0xf]
  %v601 = vld [vmem:[%s1 + $0x150] sm:$0xf]
  %v602 = vld [vmem:[%s1 + $0x154] sm:$0xf]
  %v603 = vld [vmem:[%s1 + $0x158] sm:$0xf]
  %v604 = vld [vmem:[%s1 + $0x15c] sm:$0xf]
  %v605 = vld [vmem:[%s1 + $0x160] sm:$0xf]
  %v606 = vld [vmem:[%s1 + $0x164] sm:$0xf]
  %v607 = vld [vmem:[%s1 + $0x168] sm:$0xf]
  %v608 = vld [vmem:[%s1 + $0x16c] sm:$0xf]
  %v609 = vld [vmem:[%s1 + $0x170] sm:$0xf]
  %v610 = vld [vmem:[%s1 + $0x174] sm:$0xf]
  %v611 = vld [vmem:[%s1 + $0x178] sm:$0xf]
  %v612 = vld [vmem:[%s1 + $0x17c] sm:$0xf]
  %v613 = vlaneseq
  %v614 = vshrl.u32 %v613, 7
  %v615 = vsub.s32 0, %v614
  %v616 = vrot.slane %v179, %v615
  %v633 = vunpack.c.l.b16 %v597
  %v634 = vunpack.c.l.b16 %v598
  %v635 = vunpack.c.l.b16 %v599
  %v636 = vunpack.c.l.b16 %v600
  %v637 = vunpack.c.l.b16 %v601
  %v638 = vunpack.c.l.b16 %v602
  %v639 = vunpack.c.l.b16 %v603
  %v640 = vunpack.c.l.b16 %v604
  %v641 = vunpack.c.l.b16 %v605
  %v642 = vunpack.c.l.b16 %v606
  %v643 = vunpack.c.l.b16 %v607
  %v644 = vunpack.c.l.b16 %v608
  %v645 = vunpack.c.l.b16 %v609
  %v646 = vunpack.c.l.b16 %v610
  %v647 = vunpack.c.l.b16 %v611
  %v648 = vunpack.c.l.b16 %v612
  %v649 = vpack.c.b16 %v634, %v633
  %v650 = vpack.c.b16 %v636, %v635
  %v651 = vpack.c.b16 %v638, %v637
  %v652 = vpack.c.b16 %v640, %v639
  %v653 = vpack.c.b16 %v642, %v641
  %v654 = vpack.c.b16 %v644, %v643
  %v655 = vpack.c.b16 %v646, %v645
  %v656 = vpack.c.b16 %v648, %v647
  %665 = vmatprep.subr.bf16.mxu0 0
  %666 = vmatpush1.bf16.msra.mxu0 %v656
  %667 = vmatprep.subr.bf16.mxu0 0
  %668 = vmatpush1.bf16.msra.mxu0 %v655
  %669 = vmatprep.subr.bf16.mxu0 0
  %670 = vmatpush1.bf16.msra.mxu0 %v654
  %671 = vmatprep.subr.bf16.mxu0 0
  %672 = vmatpush1.bf16.msra.mxu0 %v653
  %673 = vmatprep.subr.bf16.mxu0 0
  %674 = vmatpush1.bf16.msra.mxu0 %v652
  %675 = vmatprep.subr.bf16.mxu0 0
  %676 = vmatpush1.bf16.msra.mxu0 %v651
  %677 = vmatprep.subr.bf16.mxu0 0
  %678 = vmatpush1.bf16.msra.mxu0 %v650
  %679 = vmatprep.subr.bf16.mxu0 0
  %680 = vmatpush1.bf16.msra.mxu0 %v649
  %681 = vmatprep.subr.bf16.mxu0 0
  %682 = vmatpush2.bf16.msra.mxu0 0
  %683 = vmatprep.subr.bf16.mxu0 0
  %684 = vmatpush2.bf16.msra.mxu0 0
  %685 = vmatprep.subr.bf16.mxu0 0
  %686 = vmatpush2.bf16.msra.mxu0 0
  %687 = vmatprep.subr.bf16.mxu0 0
  %688 = vmatpush2.bf16.msra.mxu0 0
  %689 = vmatprep.subr.bf16.mxu0 0
  %690 = vmatpush2.bf16.msra.mxu0 0
  %691 = vmatprep.subr.bf16.mxu0 0
  %692 = vmatpush2.bf16.msra.mxu0 0
  %693 = vmatprep.subr.bf16.mxu0 0
  %694 = vmatpush2.bf16.msra.mxu0 0
  %695 = vmatprep.subr.bf16.mxu0 0
  %696 = vmatpush2.bf16.msra.mxu0 0
  %697 = vmatprep.mubr.bf16.mxu0 0
  %698 = vmatmul.mubr.bf16.gmra.mxu0 %v596
  %v699 = vpop.f32.mrf.mxu0
  %v700 = vadd.f32 %v616, %v699
  %v701 = vpop.f32.mrf.mxu0
  %v702 = vpop.f32.mrf.mxu0
  %v703 = vadd.f32 %v616, %v702
  %v704 = vpop.f32.mrf.mxu0
  %705 = vdwg.mxu0
  %v706 = vmul.f32 %v700, %v700
  %v707 = vmul.f32 %v703, %v703
  %v708 = vmul.f32 %v700, %v706
  %v709 = vmul.f32 %v703, %v707
  %v710 = vmul.f32 %v708, 0.044715
  %v711 = vmul.f32 %v709, 0.044715
  %v712 = vadd.f32 %v700, %v710
  %v713 = vadd.f32 %v703, %v711
  %v714 = vmul.f32 %v712, 0.7978846
  %v715 = vmul.f32 %v713, 0.7978846
  %v716 = vtanh.pop %v714
  %v717 = vtanh.pop %v715
  %v718 = vadd.f32 %v716, 1.0
  %v719 = vadd.f32 %v717, 1.0
  %v720 = vmul.f32 %v718, 0.5
  %v721 = vmul.f32 %v719, 0.5
  %v722 = vmul.f32 %v700, %v720
  %v723 = vmul.f32 %v703, %v721
  %v724 = vpack.c.bf16 %v723, %v722
  %v725 = vld [vmem:[%s1 + $0x180] sm:$0xf]
  %v726 = vld [vmem:[%s1 + $0x184] sm:$0xf]
  %v727 = vld [vmem:[%s1 + $0x188] sm:$0xf]
  %v728 = vld [vmem:[%s1 + $0x18c] sm:$0xf]
  %v729 = vld [vmem:[%s1 + $0x190] sm:$0xf]
  %v730 = vld [vmem:[%s1 + $0x194] sm:$0xf]
  %v731 = vld [vmem:[%s1 + $0x198] sm:$0xf]
  %v732 = vld [vmem:[%s1 + $0x19c] sm:$0xf]
  %v733 = vld [vmem:[%s1 + $0x1a0] sm:$0xf]
  %v734 = vld [vmem:[%s1 + $0x1a4] sm:$0xf]
  %v735 = vld [vmem:[%s1 + $0x1a8] sm:$0xf]
  %v736 = vld [vmem:[%s1 + $0x1ac] sm:$0xf]
  %v737 = vld [vmem:[%s1 + $0x1b0] sm:$0xf]
  %v738 = vld [vmem:[%s1 + $0x1b4] sm:$0xf]
  %v739 = vld [vmem:[%s1 + $0x1b8] sm:$0xf]
  %v740 = vld [vmem:[%s1 + $0x1bc] sm:$0xf]
  %v741 = vlaneseq
  %v742 = vshrl.u32 %v741, 7
  %v743 = vsub.s32 0, %v742
  %v744 = vrot.slane %v180, %v743
  %v761 = vunpack.c.l.b16 %v725
  %v762 = vunpack.c.l.b16 %v726
  %v763 = vunpack.c.l.b16 %v727
  %v764 = vunpack.c.l.b16 %v728
  %v765 = vunpack.c.l.b16 %v729
  %v766 = vunpack.c.l.b16 %v730
  %v767 = vunpack.c.l.b16 %v731
  %v768 = vunpack.c.l.b16 %v732
  %v769 = vunpack.c.l.b16 %v733
  %v770 = vunpack.c.l.b16 %v734
  %v771 = vunpack.c.l.b16 %v735
  %v772 = vunpack.c.l.b16 %v736
  %v773 = vunpack.c.l.b16 %v737
  %v774 = vunpack.c.l.b16 %v738
  %v775 = vunpack.c.l.b16 %v739
  %v776 = vunpack.c.l.b16 %v740
  %v777 = vpack.c.b16 %v762, %v761
  %v778 = vpack.c.b16 %v764, %v763
  %v779 = vpack.c.b16 %v766, %v765
  %v780 = vpack.c.b16 %v768, %v767
  %v781 = vpack.c.b16 %v770, %v769
  %v782 = vpack.c.b16 %v772, %v771
  %v783 = vpack.c.b16 %v774, %v773
  %v784 = vpack.c.b16 %v776, %v775
  %793 = vmatprep.subr.bf16.mxu0 0
  %794 = vmatpush1.bf16.msra.mxu0 %v784
  %795 = vmatprep.subr.bf16.mxu0 0
  %796 = vmatpush1.bf16.msra.mxu0 %v783
  %797 = vmatprep.subr.bf16.mxu0 0
  %798 = vmatpush1.bf16.msra.mxu0 %v782
  %799 = vmatprep.subr.bf16.mxu0 0
  %800 = vmatpush1.bf16.msra.mxu0 %v781
  %801 = vmatprep.subr.bf16.mxu0 0
  %802 = vmatpush1.bf16.msra.mxu0 %v780
  %803 = vmatprep.subr.bf16.mxu0 0
  %804 = vmatpush1.bf16.msra.mxu0 %v779
  %805 = vmatprep.subr.bf16.mxu0 0
  %806 = vmatpush1.bf16.msra.mxu0 %v778
  %807 = vmatprep.subr.bf16.mxu0 0
  %808 = vmatpush1.bf16.msra.mxu0 %v777
  %809 = vmatprep.subr.bf16.mxu0 0
  %810 = vmatpush2.bf16.msra.mxu0 0
  %811 = vmatprep.subr.bf16.mxu0 0
  %812 = vmatpush2.bf16.msra.mxu0 0
  %813 = vmatprep.subr.bf16.mxu0 0
  %814 = vmatpush2.bf16.msra.mxu0 0
  %815 = vmatprep.subr.bf16.mxu0 0
  %816 = vmatpush2.bf16.msra.mxu0 0
  %817 = vmatprep.subr.bf16.mxu0 0
  %818 = vmatpush2.bf16.msra.mxu0 0
  %819 = vmatprep.subr.bf16.mxu0 0
  %820 = vmatpush2.bf16.msra.mxu0 0
  %821 = vmatprep.subr.bf16.mxu0 0
  %822 = vmatpush2.bf16.msra.mxu0 0
  %823 = vmatprep.subr.bf16.mxu0 0
  %824 = vmatpush2.bf16.msra.mxu0 0
  %825 = vmatprep.mubr.bf16.mxu0 0
  %826 = vmatmul.mubr.bf16.gmra.mxu0 %v724
  %v827 = vpop.f32.mrf.mxu0
  %v828 = vadd.f32 %v744, %v827
  %v829 = vpop.f32.mrf.mxu0
  %v830 = vpop.f32.mrf.mxu0
  %v831 = vadd.f32 %v744, %v830
  %v832 = vpop.f32.mrf.mxu0
  %833 = vdwg.mxu0
  %v834 = vadd.f32 %v828, %v594
  %v835 = vadd.f32 %v831, %v595
  %836 = vadd.xlane.f32.xlu0 %v834
  %v837 = vpop.xlane.xlu0 %836
  %838 = vadd.xlane.f32.xlu0 %v835
  %v839 = vpop.xlane.xlu0 %838
  %v840 = vmul.f32 %v837, 0.03125
  %v841 = vmul.f32 %v839, 0.03125
  %v842 = vmul.f32 %v834, %v834
  %v843 = vmul.f32 %v835, %v835
  %844 = vadd.xlane.f32.xlu0 %v842
  %v845 = vpop.xlane.xlu0 %844
  %846 = vadd.xlane.f32.xlu0 %v843
  %v847 = vpop.xlane.xlu0 %846
  %v848 = vmul.f32 %v845, 0.03125
  %v849 = vmul.f32 %v847, 0.03125
  %v850 = vmul.f32 %v840, %v840
  %v851 = vmul.f32 %v841, %v841
  %v852 = vsub.f32 %v848, %v850
  %v853 = vsub.f32 %v849, %v851
  %v854 = vmax.f32 %v852, 0.0
  %v855 = vmax.f32 %v853, 0.0
  %v856 = vsub.f32 %v834, %v840
  %v857 = vsub.f32 %v835, %v841
  %v858 = vadd.f32 %v854, 1e-12
  %v859 = vadd.f32 %v855, 1e-12
  %v860 = vrsqrt.pop %v858
  %v861 = vrsqrt.pop %v859
  %v862 = vmul.f32 %v856, %v860
  %v863 = vmul.f32 %v857, %v861
  %v864 = vlaneseq
  %v865 = vshrl.u32 %v864, 7
  %v866 = vsub.s32 0, %v865
  %v867 = vrot.slane %v181, %v866
  %v868 = vmul.f32 %v862, %v867
  %v869 = vmul.f32 %v863, %v867
  %v870 = vlaneseq
  %v871 = vshrl.u32 %v870, 7
  %v872 = vsub.s32 0, %v871
  %v873 = vrot.slane %v182, %v872
  %v874 = vadd.f32 %v868, %v873
  %v875 = vadd.f32 %v869, %v873
  %v876 = vld [vmem:[%s2 + $0x10] sm:$0x1]
  %v877 = vld [vmem:[%s2 + $0x11] sm:$0x1]
  %v878 = vld [vmem:[%s2 + $0x12] sm:$0x1]
  %v879 = vld [vmem:[%s2 + $0x13] sm:$0x1]
  %v880 = vld [vmem:[%s2 + $0x14] sm:$0x1]
  %v881 = vld [vmem:[%s2 + $0x15] sm:$0x1]
  %v882 = vld [vmem:[%s2 + $0x16] sm:$0x1]
  %v883 = vld [vmem:[%s2 + $0x17] sm:$0x1]
  %v884 = vpack.c.bf16 %v875, %v874
  %v885 = vld [vmem:[%s1 + $0x1c0] sm:$0xf]
  %v886 = vld [vmem:[%s1 + $0x1c4] sm:$0xf]
  %v887 = vld [vmem:[%s1 + $0x1c8] sm:$0xf]
  %v888 = vld [vmem:[%s1 + $0x1cc] sm:$0xf]
  %v889 = vld [vmem:[%s1 + $0x1d0] sm:$0xf]
  %v890 = vld [vmem:[%s1 + $0x1d4] sm:$0xf]
  %v891 = vld [vmem:[%s1 + $0x1d8] sm:$0xf]
  %v892 = vld [vmem:[%s1 + $0x1dc] sm:$0xf]
  %v893 = vld [vmem:[%s1 + $0x1e0] sm:$0xf]
  %v894 = vld [vmem:[%s1 + $0x1e4] sm:$0xf]
  %v895 = vld [vmem:[%s1 + $0x1e8] sm:$0xf]
  %v896 = vld [vmem:[%s1 + $0x1ec] sm:$0xf]
  %v897 = vld [vmem:[%s1 + $0x1f0] sm:$0xf]
  %v898 = vld [vmem:[%s1 + $0x1f4] sm:$0xf]
  %v899 = vld [vmem:[%s1 + $0x1f8] sm:$0xf]
  %v900 = vld [vmem:[%s1 + $0x1fc] sm:$0xf]
  %v901 = vlaneseq
  %v902 = vshrl.u32 %v901, 7
  %v903 = vsub.s32 0, %v902
  %v904 = vrot.slane %v876, %v903
  %v921 = vunpack.c.l.b16 %v885
  %v922 = vunpack.c.l.b16 %v886
  %v923 = vunpack.c.l.b16 %v887
  %v924 = vunpack.c.l.b16 %v888
  %v925 = vunpack.c.l.b16 %v889
  %v926 = vunpack.c.l.b16 %v890
  %v927 = vunpack.c.l.b16 %v891
  %v928 = vunpack.c.l.b16 %v892
  %v929 = vunpack.c.l.b16 %v893
  %v930 = vunpack.c.l.b16 %v894
  %v931 = vunpack.c.l.b16 %v895
  %v932 = vunpack.c.l.b16 %v896
  %v933 = vunpack.c.l.b16 %v897
  %v934 = vunpack.c.l.b16 %v898
  %v935 = vunpack.c.l.b16 %v899
  %v936 = vunpack.c.l.b16 %v900
  %v937 = vpack.c.b16 %v922, %v921
  %v938 = vpack.c.b16 %v924, %v923
  %v939 = vpack.c.b16 %v926, %v925
  %v940 = vpack.c.b16 %v928, %v927
  %v941 = vpack.c.b16 %v930, %v929
  %v942 = vpack.c.b16 %v932, %v931
  %v943 = vpack.c.b16 %v934, %v933
  %v944 = vpack.c.b16 %v936, %v935
  %953 = vmatprep.subr.bf16.mxu0 0
  %954 = vmatpush1.bf16.msra.mxu0 %v944
  %955 = vmatprep.subr.bf16.mxu0 0
  %956 = vmatpush1.bf16.msra.mxu0 %v943
  %957 = vmatprep.subr.bf16.mxu0 0
  %958 = vmatpush1.bf16.msra.mxu0 %v942
  %959 = vmatprep.subr.bf16.mxu0 0
  %960 = vmatpush1.bf16.msra.mxu0 %v941
  %961 = vmatprep.subr.bf16.mxu0 0
  %962 = vmatpush1.bf16.msra.mxu0 %v940
  %963 = vmatprep.subr.bf16.mxu0 0
  %964 = vmatpush1.bf16.msra.mxu0 %v939
  %965 = vmatprep.subr.bf16.mxu0 0
  %966 = vmatpush1.bf16.msra.mxu0 %v938
  %967 = vmatprep.subr.bf16.mxu0 0
  %968 = vmatpush1.bf16.msra.mxu0 %v937
  %969 = vmatprep.subr.bf16.mxu0 0
  %970 = vmatpush2.bf16.msra.mxu0 0
  %971 = vmatprep.subr.bf16.mxu0 0
  %972 = vmatpush2.bf16.msra.mxu0 0
  %973 = vmatprep.subr.bf16.mxu0 0
  %974 = vmatpush2.bf16.msra.mxu0 0
  %975 = vmatprep.subr.bf16.mxu0 0
  %976 = vmatpush2.bf16.msra.mxu0 0
  %977 = vmatprep.subr.bf16.mxu0 0
  %978 = vmatpush2.bf16.msra.mxu0 0
  %979 = vmatprep.subr.bf16.mxu0 0
  %980 = vmatpush2.bf16.msra.mxu0 0
  %981 = vmatprep.subr.bf16.mxu0 0
  %982 = vmatpush2.bf16.msra.mxu0 0
  %983 = vmatprep.subr.bf16.mxu0 0
  %984 = vmatpush2.bf16.msra.mxu0 0
  %985 = vmatprep.mubr.bf16.mxu0 0
  %986 = vmatmul.mubr.bf16.gmra.mxu0 %v884
  %v987 = vpop.f32.mrf.mxu0
  %v988 = vadd.f32 %v904, %v987
  %v989 = vpop.f32.mrf.mxu0
  %v990 = vpop.f32.mrf.mxu0
  %v991 = vadd.f32 %v904, %v990
  %v992 = vpop.f32.mrf.mxu0
  %993 = vdwg.mxu0
  %v994 = vpack.c.bf16 %v991, %v988
  %996 = vrot.lane.b32.xlu0 %v994, 112
  %v997 = vpop.permute.xlu0 %996
  %998 = vrot.lane.b32.xlu0 %v994, 96
  %v999 = vpop.permute.xlu0 %998
  %1000 = vrot.lane.b32.xlu0 %v997, 96
  %v1001 = vpop.permute.xlu0 %1000
  %v1003 = vsel %vm301, %v994, 0
  %v1006 = vsel %vm301, %v997, 0
  %v1009 = vsel %vm301, %v999, 0
  %v1012 = vsel %vm301, %v1001, 0
  %1014 = vmatprep.subr.bf16.mxu0 0
  %1015 = vmatpush1.bf16.xpose.msra.mxu0 0
  %1016 = vmatprep.subr.bf16.mxu0 0
  %1017 = vmatpush1.bf16.xpose.msra.mxu0 0
  %1018 = vmatprep.subr.bf16.mxu0 0
  %1019 = vmatpush1.bf16.xpose.msra.mxu0 0
  %1020 = vmatprep.subr.bf16.mxu0 0
  %1021 = vmatpush1.bf16.xpose.msra.mxu0 0
  %1022 = vmatprep.subr.bf16.mxu0 0
  %1023 = vmatpush1.bf16.xpose.msra.mxu0 0
  %1024 = vmatprep.subr.bf16.mxu0 0
  %1025 = vmatpush1.bf16.xpose.msra.mxu0 0
  %1026 = vmatprep.subr.bf16.mxu0 0
  %1027 = vmatpush1.bf16.xpose.msra.mxu0 %v1012
  %1028 = vmatprep.subr.bf16.mxu0 0
  %1029 = vmatpush1.bf16.xpose.msra.mxu0 %v1009
  %1030 = vmatprep.subr.bf16.mxu0 0
  %1031 = vmatpush2.bf16.xpose.msra.mxu0 0
  %1032 = vmatprep.subr.bf16.mxu0 0
  %1033 = vmatpush2.bf16.xpose.msra.mxu0 0
  %1034 = vmatprep.subr.bf16.mxu0 0
  %1035 = vmatpush2.bf16.xpose.msra.mxu0 0
  %1036 = vmatprep.subr.bf16.mxu0 0
  %1037 = vmatpush2.bf16.xpose.msra.mxu0 0
  %1038 = vmatprep.subr.bf16.mxu0 0
  %1039 = vmatpush2.bf16.xpose.msra.mxu0 0
  %1040 = vmatprep.subr.bf16.mxu0 0
  %1041 = vmatpush2.bf16.xpose.msra.mxu0 0
  %1042 = vmatprep.subr.bf16.mxu0 0
  %1043 = vmatpush2.bf16.xpose.msra.mxu0 0
  %1044 = vmatprep.subr.bf16.mxu0 0
  %1045 = vmatpush2.bf16.xpose.msra.mxu0 0
  %1046 = vmatprep.mubr.bf16.mxu0 0
  %1047 = vmatmul.mubr.bf16.gmra.mxu0 %v1003
  %v1048 = vpop.f32.mrf.mxu0
  %v1049 = vadd.f32 0.0, %v1048
  %v1050 = vpop.f32.mrf.mxu0
  %v1051 = vpop.f32.mrf.mxu0
  %v1052 = vadd.f32 0.0, %v1051
  %v1053 = vpop.f32.mrf.mxu0
  %1054 = vmatprep.mubr.bf16.mxu0 0
  %1055 = vmatmul.mubr.bf16.gmra.mxu0 %v1006
  %v1056 = vpop.f32.mrf.mxu0
  %v1057 = vadd.f32 0.0, %v1056
  %v1058 = vpop.f32.mrf.mxu0
  %v1059 = vpop.f32.mrf.mxu0
  %v1060 = vadd.f32 0.0, %v1059
  %v1061 = vpop.f32.mrf.mxu0
  %1062 = vdwg.mxu0
  %v1063 = vmul.f32 %v1049, 0.25
  %v1064 = vmul.f32 %v1052, 0.25
  %v1065 = vmul.f32 %v1057, 0.25
  %v1066 = vmul.f32 %v1060, 0.25
  %v1067 = vadd.f32 %v1063, %v17
  %v1068 = vadd.f32 %v1064, %v18
  %v1069 = vadd.f32 %v1065, %v19
  %v1070 = vadd.f32 %v1066, %v20
  %v1071 = vsel %vm371, %v1067, -inf
  %1072 = vmax.xlane.f32.xlu0 %v1071
  %v1073 = vpop.xlane.xlu0 %1072
  %v1074 = vsel %vm371, %v1068, -inf
  %1075 = vmax.xlane.f32.xlu0 %v1074
  %v1076 = vpop.xlane.xlu0 %1075
  %v1077 = vsel %vm371, %v1069, -inf
  %1078 = vmax.xlane.f32.xlu0 %v1077
  %v1079 = vpop.xlane.xlu0 %1078
  %v1080 = vsel %vm371, %v1070, -inf
  %1081 = vmax.xlane.f32.xlu0 %v1080
  %v1082 = vpop.xlane.xlu0 %1081
  %v1083 = vsub.f32 %v1067, %v1073
  %v1084 = vsub.f32 %v1068, %v1076
  %v1085 = vsub.f32 %v1069, %v1079
  %v1086 = vsub.f32 %v1070, %v1082
  %v1087 = vmul.f32 %v1083, 1.442695
  %v1088 = vpow.pop %v1087
  %v1089 = vmul.f32 %v1084, 1.442695
  %v1090 = vpow.pop %v1089
  %v1091 = vmul.f32 %v1085, 1.442695
  %v1092 = vpow.pop %v1091
  %v1093 = vmul.f32 %v1086, 1.442695
  %v1094 = vpow.pop %v1093
  %v1095 = vsel %vm371, %v1088, 0.0
  %1096 = vadd.xlane.f32.xlu0 %v1095
  %v1097 = vpop.xlane.xlu0 %1096
  %v1098 = vsel %vm371, %v1090, 0.0
  %1099 = vadd.xlane.f32.xlu0 %v1098
  %v1100 = vpop.xlane.xlu0 %1099
  %v1101 = vsel %vm371, %v1092, 0.0
  %1102 = vadd.xlane.f32.xlu0 %v1101
  %v1103 = vpop.xlane.xlu0 %1102
  %v1104 = vsel %vm371, %v1094, 0.0
  %1105 = vadd.xlane.f32.xlu0 %v1104
  %v1106 = vpop.xlane.xlu0 %1105
  %v1107 = vrcp.pop %v1097
  %v1108 = vrcp.pop %v1100
  %v1109 = vrcp.pop %v1103
  %v1110 = vrcp.pop %v1106
  %v1111 = vmul.f32 %v1088, %v1107
  %v1112 = vmul.f32 %v1090, %v1108
  %v1113 = vmul.f32 %v1092, %v1109
  %v1114 = vmul.f32 %v1094, %v1110
  %v1115 = vpack.c.bf16 %v1112, %v1111
  %v1116 = vpack.c.bf16 %v1114, %v1113
  %1117 = vrot.lane.b32.xlu0 %v994, 64
  %v1118 = vpop.permute.xlu0 %1117
  %1119 = vrot.lane.b32.xlu0 %v997, 64
  %v1120 = vpop.permute.xlu0 %1119
  %v1124 = vsel %vm371, %v1115, 0
  %v1127 = vsel %vm371, %v1116, 0
  %1129 = vmatprep.subr.bf16.mxu0 0
  %1130 = vmatpush1.bf16.msra.mxu0 0
  %1131 = vmatprep.subr.bf16.mxu0 0
  %1132 = vmatpush1.bf16.msra.mxu0 0
  %1133 = vmatprep.subr.bf16.mxu0 0
  %1134 = vmatpush1.bf16.msra.mxu0 0
  %1135 = vmatprep.subr.bf16.mxu0 0
  %1136 = vmatpush1.bf16.msra.mxu0 0
  %1137 = vmatprep.subr.bf16.mxu0 0
  %1138 = vmatpush1.bf16.msra.mxu0 0
  %1139 = vmatprep.subr.bf16.mxu0 0
  %1140 = vmatpush1.bf16.msra.mxu0 0
  %1141 = vmatprep.subr.bf16.mxu0 0
  %1142 = vmatpush1.bf16.msra.mxu0 %v1120
  %1143 = vmatprep.subr.bf16.mxu0 0
  %1144 = vmatpush1.bf16.msra.mxu0 %v1118
  %1145 = vmatprep.subr.bf16.mxu0 0
  %1146 = vmatpush2.bf16.msra.mxu0 0
  %1147 = vmatprep.subr.bf16.mxu0 0
  %1148 = vmatpush2.bf16.msra.mxu0 0
  %1149 = vmatprep.subr.bf16.mxu0 0
  %1150 = vmatpush2.bf16.msra.mxu0 0
  %1151 = vmatprep.subr.bf16.mxu0 0
  %1152 = vmatpush2.bf16.msra.mxu0 0
  %1153 = vmatprep.subr.bf16.mxu0 0
  %1154 = vmatpush2.bf16.msra.mxu0 0
  %1155 = vmatprep.subr.bf16.mxu0 0
  %1156 = vmatpush2.bf16.msra.mxu0 0
  %1157 = vmatprep.subr.bf16.mxu0 0
  %1158 = vmatpush2.bf16.msra.mxu0 0
  %1159 = vmatprep.subr.bf16.mxu0 0
  %1160 = vmatpush2.bf16.msra.mxu0 0
  %1161 = vmatprep.mubr.bf16.mxu0 0
  %1162 = vmatmul.mubr.bf16.gmra.mxu0 %v1124
  %v1163 = vpop.f32.mrf.mxu0
  %v1164 = vadd.f32 0.0, %v1163
  %v1165 = vpop.f32.mrf.mxu0
  %v1166 = vpop.f32.mrf.mxu0
  %v1167 = vadd.f32 0.0, %v1166
  %v1168 = vpop.f32.mrf.mxu0
  %1169 = vmatprep.mubr.bf16.mxu0 0
  %1170 = vmatmul.mubr.bf16.gmra.mxu0 %v1127
  %v1171 = vpop.f32.mrf.mxu0
  %v1172 = vadd.f32 0.0, %v1171
  %v1173 = vpop.f32.mrf.mxu0
  %v1174 = vpop.f32.mrf.mxu0
  %v1175 = vadd.f32 0.0, %v1174
  %v1176 = vpop.f32.mrf.mxu0
  %1177 = vdwg.mxu0
  %1180 = vrot.lane.b32.xlu0 %v1172, 16
  %v1181 = vpop.permute.xlu0 %1180
  %1182 = vrot.lane.b32.xlu0 %v1175, 16
  %v1183 = vpop.permute.xlu0 %1182
  %v1186 = vsel %vm301, %v1164, %v1181
  %v1187 = vsel %vm301, %v1167, %v1183
  %v1188 = vpack.c.bf16 %v1187, %v1186
  %v1189 = vld [vmem:[%s1 + $0x200] sm:$0xf]
  %v1190 = vld [vmem:[%s1 + $0x204] sm:$0xf]
  %v1191 = vld [vmem:[%s1 + $0x208] sm:$0xf]
  %v1192 = vld [vmem:[%s1 + $0x20c] sm:$0xf]
  %v1193 = vlaneseq
  %v1194 = vshrl.u32 %v1193, 7
  %v1195 = vsub.s32 0, %v1194
  %v1196 = vrot.slane %v877, %v1195
  %v1201 = vunpack.c.l.b16 %v1189
  %v1202 = vunpack.c.l.b16 %v1190
  %v1203 = vunpack.c.l.b16 %v1191
  %v1204 = vunpack.c.l.b16 %v1192
  %v1205 = vpack.c.b16 %v1202, %v1201
  %v1206 = vpack.c.b16 %v1204, %v1203
  %v1210 = vsel %vm371, %v1188, 0
  %1212 = vmatprep.subr.bf16.mxu0 0
  %1213 = vmatpush1.bf16.msra.mxu0 0
  %1214 = vmatprep.subr.bf16.mxu0 0
  %1215 = vmatpush1.bf16.msra.mxu0 0
  %1216 = vmatprep.subr.bf16.mxu0 0
  %1217 = vmatpush1.bf16.msra.mxu0 0
  %1218 = vmatprep.subr.bf16.mxu0 0
  %1219 = vmatpush1.bf16.msra.mxu0 0
  %1220 = vmatprep.subr.bf16.mxu0 0
  %1221 = vmatpush1.bf16.msra.mxu0 0
  %1222 = vmatprep.subr.bf16.mxu0 0
  %1223 = vmatpush1.bf16.msra.mxu0 0
  %1224 = vmatprep.subr.bf16.mxu0 0
  %1225 = vmatpush1.bf16.msra.mxu0 %v1206
  %1226 = vmatprep.subr.bf16.mxu0 0
  %1227 = vmatpush1.bf16.msra.mxu0 %v1205
  %1228 = vmatprep.subr.bf16.mxu0 0
  %1229 = vmatpush2.bf16.msra.mxu0 0
  %1230 = vmatprep.subr.bf16.mxu0 0
  %1231 = vmatpush2.bf16.msra.mxu0 0
  %1232 = vmatprep.subr.bf16.mxu0 0
  %1233 = vmatpush2.bf16.msra.mxu0 0
  %1234 = vmatprep.subr.bf16.mxu0 0
  %1235 = vmatpush2.bf16.msra.mxu0 0
  %1236 = vmatprep.subr.bf16.mxu0 0
  %1237 = vmatpush2.bf16.msra.mxu0 0
  %1238 = vmatprep.subr.bf16.mxu0 0
  %1239 = vmatpush2.bf16.msra.mxu0 0
  %1240 = vmatprep.subr.bf16.mxu0 0
  %1241 = vmatpush2.bf16.msra.mxu0 0
  %1242 = vmatprep.subr.bf16.mxu0 0
  %1243 = vmatpush2.bf16.msra.mxu0 0
  %1244 = vmatprep.mubr.bf16.mxu0 0
  %1245 = vmatmul.mubr.bf16.gmra.mxu0 %v1210
  %v1246 = vpop.f32.mrf.mxu0
  %v1247 = vadd.f32 %v1196, %v1246
  %v1248 = vpop.f32.mrf.mxu0
  %v1249 = vpop.f32.mrf.mxu0
  %v1250 = vadd.f32 %v1196, %v1249
  %v1251 = vpop.f32.mrf.mxu0
  %1252 = vdwg.mxu0
  %v1253 = vadd.f32 %v1247, %v874
  %v1254 = vadd.f32 %v1250, %v875
  %1255 = vadd.xlane.f32.xlu0 %v1253
  %v1256 = vpop.xlane.xlu0 %1255
  %1257 = vadd.xlane.f32.xlu0 %v1254
  %v1258 = vpop.xlane.xlu0 %1257
  %v1259 = vmul.f32 %v1256, 0.03125
  %v1260 = vmul.f32 %v1258, 0.03125
  %v1261 = vmul.f32 %v1253, %v1253
  %v1262 = vmul.f32 %v1254, %v1254
  %1263 = vadd.xlane.f32.xlu0 %v1261
  %v1264 = vpop.xlane.xlu0 %1263
  %1265 = vadd.xlane.f32.xlu0 %v1262
  %v1266 = vpop.xlane.xlu0 %1265
  %v1267 = vmul.f32 %v1264, 0.03125
  %v1268 = vmul.f32 %v1266, 0.03125
  %v1269 = vmul.f32 %v1259, %v1259
  %v1270 = vmul.f32 %v1260, %v1260
  %v1271 = vsub.f32 %v1267, %v1269
  %v1272 = vsub.f32 %v1268, %v1270
  %v1273 = vmax.f32 %v1271, 0.0
  %v1274 = vmax.f32 %v1272, 0.0
  %v1275 = vsub.f32 %v1253, %v1259
  %v1276 = vsub.f32 %v1254, %v1260
  %v1277 = vadd.f32 %v1273, 1e-12
  %v1278 = vadd.f32 %v1274, 1e-12
  %v1279 = vrsqrt.pop %v1277
  %v1280 = vrsqrt.pop %v1278
  %v1281 = vmul.f32 %v1275, %v1279
  %v1282 = vmul.f32 %v1276, %v1280
  %v1283 = vlaneseq
  %v1284 = vshrl.u32 %v1283, 7
  %v1285 = vsub.s32 0, %v1284
  %v1286 = vrot.slane %v878, %v1285
  %v1287 = vmul.f32 %v1281, %v1286
  %v1288 = vmul.f32 %v1282, %v1286
  %v1289 = vlaneseq
  %v1290 = vshrl.u32 %v1289, 7
  %v1291 = vsub.s32 0, %v1290
  %v1292 = vrot.slane %v879, %v1291
  %v1293 = vadd.f32 %v1287, %v1292
  %v1294 = vadd.f32 %v1288, %v1292
  %v1295 = vpack.c.bf16 %v1294, %v1293
  %v1296 = vld [vmem:[%s1 + $0x240] sm:$0xf]
  %v1297 = vld [vmem:[%s1 + $0x244] sm:$0xf]
  %v1298 = vld [vmem:[%s1 + $0x248] sm:$0xf]
  %v1299 = vld [vmem:[%s1 + $0x24c] sm:$0xf]
  %v1300 = vld [vmem:[%s1 + $0x250] sm:$0xf]
  %v1301 = vld [vmem:[%s1 + $0x254] sm:$0xf]
  %v1302 = vld [vmem:[%s1 + $0x258] sm:$0xf]
  %v1303 = vld [vmem:[%s1 + $0x25c] sm:$0xf]
  %v1304 = vld [vmem:[%s1 + $0x260] sm:$0xf]
  %v1305 = vld [vmem:[%s1 + $0x264] sm:$0xf]
  %v1306 = vld [vmem:[%s1 + $0x268] sm:$0xf]
  %v1307 = vld [vmem:[%s1 + $0x26c] sm:$0xf]
  %v1308 = vld [vmem:[%s1 + $0x270] sm:$0xf]
  %v1309 = vld [vmem:[%s1 + $0x274] sm:$0xf]
  %v1310 = vld [vmem:[%s1 + $0x278] sm:$0xf]
  %v1311 = vld [vmem:[%s1 + $0x27c] sm:$0xf]
  %v1312 = vlaneseq
  %v1313 = vshrl.u32 %v1312, 7
  %v1314 = vsub.s32 0, %v1313
  %v1315 = vrot.slane %v880, %v1314
  %v1332 = vunpack.c.l.b16 %v1296
  %v1333 = vunpack.c.l.b16 %v1297
  %v1334 = vunpack.c.l.b16 %v1298
  %v1335 = vunpack.c.l.b16 %v1299
  %v1336 = vunpack.c.l.b16 %v1300
  %v1337 = vunpack.c.l.b16 %v1301
  %v1338 = vunpack.c.l.b16 %v1302
  %v1339 = vunpack.c.l.b16 %v1303
  %v1340 = vunpack.c.l.b16 %v1304
  %v1341 = vunpack.c.l.b16 %v1305
  %v1342 = vunpack.c.l.b16 %v1306
  %v1343 = vunpack.c.l.b16 %v1307
  %v1344 = vunpack.c.l.b16 %v1308
  %v1345 = vunpack.c.l.b16 %v1309
  %v1346 = vunpack.c.l.b16 %v1310
  %v1347 = vunpack.c.l.b16 %v1311
  %v1348 = vpack.c.b16 %v1333, %v1332
  %v1349 = vpack.c.b16 %v1335, %v1334
  %v1350 = vpack.c.b16 %v1337, %v1336
  %v1351 = vpack.c.b16 %v1339, %v1338
  %v1352 = vpack.c.b16 %v1341, %v1340
  %v1353 = vpack.c.b16 %v1343, %v1342
  %v1354 = vpack.c.b16 %v1345, %v1344
  %v1355 = vpack.c.b16 %v1347, %v1346
  %1364 = vmatprep.subr.bf16.mxu0 0
  %1365 = vmatpush1.bf16.msra.mxu0 %v1355
  %1366 = vmatprep.subr.bf16.mxu0 0
  %1367 = vmatpush1.bf16.msra.mxu0 %v1354
  %1368 = vmatprep.subr.bf16.mxu0 0
  %1369 = vmatpush1.bf16.msra.mxu0 %v1353
  %1370 = vmatprep.subr.bf16.mxu0 0
  %1371 = vmatpush1.bf16.msra.mxu0 %v1352
  %1372 = vmatprep.subr.bf16.mxu0 0
  %1373 = vmatpush1.bf16.msra.mxu0 %v1351
  %1374 = vmatprep.subr.bf16.mxu0 0
  %1375 = vmatpush1.bf16.msra.mxu0 %v1350
  %1376 = vmatprep.subr.bf16.mxu0 0
  %1377 = vmatpush1.bf16.msra.mxu0 %v1349
  %1378 = vmatprep.subr.bf16.mxu0 0
  %1379 = vmatpush1.bf16.msra.mxu0 %v1348
  %1380 = vmatprep.subr.bf16.mxu0 0
  %1381 = vmatpush2.bf16.msra.mxu0 0
  %1382 = vmatprep.subr.bf16.mxu0 0
  %1383 = vmatpush2.bf16.msra.mxu0 0
  %1384 = vmatprep.subr.bf16.mxu0 0
  %1385 = vmatpush2.bf16.msra.mxu0 0
  %1386 = vmatprep.subr.bf16.mxu0 0
  %1387 = vmatpush2.bf16.msra.mxu0 0
  %1388 = vmatprep.subr.bf16.mxu0 0
  %1389 = vmatpush2.bf16.msra.mxu0 0
  %1390 = vmatprep.subr.bf16.mxu0 0
  %1391 = vmatpush2.bf16.msra.mxu0 0
  %1392 = vmatprep.subr.bf16.mxu0 0
  %1393 = vmatpush2.bf16.msra.mxu0 0
  %1394 = vmatprep.subr.bf16.mxu0 0
  %1395 = vmatpush2.bf16.msra.mxu0 0
  %1396 = vmatprep.mubr.bf16.mxu0 0
  %1397 = vmatmul.mubr.bf16.gmra.mxu0 %v1295
  %v1398 = vpop.f32.mrf.mxu0
  %v1399 = vadd.f32 %v1315, %v1398
  %v1400 = vpop.f32.mrf.mxu0
  %v1401 = vpop.f32.mrf.mxu0
  %v1402 = vadd.f32 %v1315, %v1401
  %v1403 = vpop.f32.mrf.mxu0
  %1404 = vdwg.mxu0
  %v1405 = vmul.f32 %v1399, %v1399
  %v1406 = vmul.f32 %v1402, %v1402
  %v1407 = vmul.f32 %v1399, %v1405
  %v1408 = vmul.f32 %v1402, %v1406
  %v1409 = vmul.f32 %v1407, 0.044715
  %v1410 = vmul.f32 %v1408, 0.044715
  %v1411 = vadd.f32 %v1399, %v1409
  %v1412 = vadd.f32 %v1402, %v1410
  %v1413 = vmul.f32 %v1411, 0.7978846
  %v1414 = vmul.f32 %v1412, 0.7978846
  %v1415 = vtanh.pop %v1413
  %v1416 = vtanh.pop %v1414
  %v1417 = vadd.f32 %v1415, 1.0
  %v1418 = vadd.f32 %v1416, 1.0
  %v1419 = vmul.f32 %v1417, 0.5
  %v1420 = vmul.f32 %v1418, 0.5
  %v1421 = vmul.f32 %v1399, %v1419
  %v1422 = vmul.f32 %v1402, %v1420
  %v1423 = vpack.c.bf16 %v1422, %v1421
  %v1424 = vld [vmem:[%s1 + $0x280] sm:$0xf]
  %v1425 = vld [vmem:[%s1 + $0x284] sm:$0xf]
  %v1426 = vld [vmem:[%s1 + $0x288] sm:$0xf]
  %v1427 = vld [vmem:[%s1 + $0x28c] sm:$0xf]
  %v1428 = vld [vmem:[%s1 + $0x290] sm:$0xf]
  %v1429 = vld [vmem:[%s1 + $0x294] sm:$0xf]
  %v1430 = vld [vmem:[%s1 + $0x298] sm:$0xf]
  %v1431 = vld [vmem:[%s1 + $0x29c] sm:$0xf]
  %v1432 = vld [vmem:[%s1 + $0x2a0] sm:$0xf]
  %v1433 = vld [vmem:[%s1 + $0x2a4] sm:$0xf]
  %v1434 = vld [vmem:[%s1 + $0x2a8] sm:$0xf]
  %v1435 = vld [vmem:[%s1 + $0x2ac] sm:$0xf]
  %v1436 = vld [vmem:[%s1 + $0x2b0] sm:$0xf]
  %v1437 = vld [vmem:[%s1 + $0x2b4] sm:$0xf]
  %v1438 = vld [vmem:[%s1 + $0x2b8] sm:$0xf]
  %v1439 = vld [vmem:[%s1 + $0x2bc] sm:$0xf]
  %v1440 = vlaneseq
  %v1441 = vshrl.u32 %v1440, 7
  %v1442 = vsub.s32 0, %v1441
  %v1443 = vrot.slane %v881, %v1442
  %v1460 = vunpack.c.l.b16 %v1424
  %v1461 = vunpack.c.l.b16 %v1425
  %v1462 = vunpack.c.l.b16 %v1426
  %v1463 = vunpack.c.l.b16 %v1427
  %v1464 = vunpack.c.l.b16 %v1428
  %v1465 = vunpack.c.l.b16 %v1429
  %v1466 = vunpack.c.l.b16 %v1430
  %v1467 = vunpack.c.l.b16 %v1431
  %v1468 = vunpack.c.l.b16 %v1432
  %v1469 = vunpack.c.l.b16 %v1433
  %v1470 = vunpack.c.l.b16 %v1434
  %v1471 = vunpack.c.l.b16 %v1435
  %v1472 = vunpack.c.l.b16 %v1436
  %v1473 = vunpack.c.l.b16 %v1437
  %v1474 = vunpack.c.l.b16 %v1438
  %v1475 = vunpack.c.l.b16 %v1439
  %v1476 = vpack.c.b16 %v1461, %v1460
  %v1477 = vpack.c.b16 %v1463, %v1462
  %v1478 = vpack.c.b16 %v1465, %v1464
  %v1479 = vpack.c.b16 %v1467, %v1466
  %v1480 = vpack.c.b16 %v1469, %v1468
  %v1481 = vpack.c.b16 %v1471, %v1470
  %v1482 = vpack.c.b16 %v1473, %v1472
  %v1483 = vpack.c.b16 %v1475, %v1474
  %1492 = vmatprep.subr.bf16.mxu0 0
  %1493 = vmatpush1.bf16.msra.mxu0 %v1483
  %1494 = vmatprep.subr.bf16.mxu0 0
  %1495 = vmatpush1.bf16.msra.mxu0 %v1482
  %1496 = vmatprep.subr.bf16.mxu0 0
  %1497 = vmatpush1.bf16.msra.mxu0 %v1481
  %1498 = vmatprep.subr.bf16.mxu0 0
  %1499 = vmatpush1.bf16.msra.mxu0 %v1480
  %1500 = vmatprep.subr.bf16.mxu0 0
  %1501 = vmatpush1.bf16.msra.mxu0 %v1479
  %1502 = vmatprep.subr.bf16.mxu0 0
  %1503 = vmatpush1.bf16.msra.mxu0 %v1478
  %1504 = vmatprep.subr.bf16.mxu0 0
  %1505 = vmatpush1.bf16.msra.mxu0 %v1477
  %1506 = vmatprep.subr.bf16.mxu0 0
  %1507 = vmatpush1.bf16.msra.mxu0 %v1476
  %1508 = vmatprep.subr.bf16.mxu0 0
  %1509 = vmatpush2.bf16.msra.mxu0 0
  %1510 = vmatprep.subr.bf16.mxu0 0
  %1511 = vmatpush2.bf16.msra.mxu0 0
  %1512 = vmatprep.subr.bf16.mxu0 0
  %1513 = vmatpush2.bf16.msra.mxu0 0
  %1514 = vmatprep.subr.bf16.mxu0 0
  %1515 = vmatpush2.bf16.msra.mxu0 0
  %1516 = vmatprep.subr.bf16.mxu0 0
  %1517 = vmatpush2.bf16.msra.mxu0 0
  %1518 = vmatprep.subr.bf16.mxu0 0
  %1519 = vmatpush2.bf16.msra.mxu0 0
  %1520 = vmatprep.subr.bf16.mxu0 0
  %1521 = vmatpush2.bf16.msra.mxu0 0
  %1522 = vmatprep.subr.bf16.mxu0 0
  %1523 = vmatpush2.bf16.msra.mxu0 0
  %1524 = vmatprep.mubr.bf16.mxu0 0
  %1525 = vmatmul.mubr.bf16.gmra.mxu0 %v1423
  %v1526 = vpop.f32.mrf.mxu0
  %v1527 = vadd.f32 %v1443, %v1526
  %v1528 = vpop.f32.mrf.mxu0
  %v1529 = vpop.f32.mrf.mxu0
  %v1530 = vadd.f32 %v1443, %v1529
  %v1531 = vpop.f32.mrf.mxu0
  %1532 = vdwg.mxu0
  %v1533 = vadd.f32 %v1527, %v1293
  %v1534 = vadd.f32 %v1530, %v1294
  %1535 = vadd.xlane.f32.xlu0 %v1533
  %v1536 = vpop.xlane.xlu0 %1535
  %1537 = vadd.xlane.f32.xlu0 %v1534
  %v1538 = vpop.xlane.xlu0 %1537
  %v1539 = vmul.f32 %v1536, 0.03125
  %v1540 = vmul.f32 %v1538, 0.03125
  %v1541 = vmul.f32 %v1533, %v1533
  %v1542 = vmul.f32 %v1534, %v1534
  %1543 = vadd.xlane.f32.xlu0 %v1541
  %v1544 = vpop.xlane.xlu0 %1543
  %1545 = vadd.xlane.f32.xlu0 %v1542
  %v1546 = vpop.xlane.xlu0 %1545
  %v1547 = vmul.f32 %v1544, 0.03125
  %v1548 = vmul.f32 %v1546, 0.03125
  %v1549 = vmul.f32 %v1539, %v1539
  %v1550 = vmul.f32 %v1540, %v1540
  %v1551 = vsub.f32 %v1547, %v1549
  %v1552 = vsub.f32 %v1548, %v1550
  %v1553 = vmax.f32 %v1551, 0.0
  %v1554 = vmax.f32 %v1552, 0.0
  %v1555 = vsub.f32 %v1533, %v1539
  %v1556 = vsub.f32 %v1534, %v1540
  %v1557 = vadd.f32 %v1553, 1e-12
  %v1558 = vadd.f32 %v1554, 1e-12
  %v1559 = vrsqrt.pop %v1557
  %v1560 = vrsqrt.pop %v1558
  %v1561 = vmul.f32 %v1555, %v1559
  %v1562 = vmul.f32 %v1556, %v1560
  %v1563 = vlaneseq
  %v1564 = vshrl.u32 %v1563, 7
  %v1565 = vsub.s32 0, %v1564
  %v1566 = vrot.slane %v882, %v1565
  %v1567 = vmul.f32 %v1561, %v1566
  %v1568 = vmul.f32 %v1562, %v1566
  %v1569 = vlaneseq
  %v1570 = vshrl.u32 %v1569, 7
  %v1571 = vsub.s32 0, %v1570
  %v1572 = vrot.slane %v883, %v1571
  %v1573 = vadd.f32 %v1567, %v1572
  %v1574 = vadd.f32 %v1568, %v1572
  %v1575 = vpack.c.bf16 %v1573, %v1573
  %v1576 = vpack.c.bf16 %v1574, %v1574
  %v1577 = vld [vmem:[%s1 + $0x40] sm:$0xf]
  %v1578 = vld [vmem:[%s1 + $0x44] sm:$0xf]
  %v1579 = vld [vmem:[%s1 + $0x48] sm:$0xf]
  %v1580 = vld [vmem:[%s1 + $0x4c] sm:$0xf]
  %v1581 = vld [vmem:[%s1 + $0x50] sm:$0xf]
  %v1582 = vld [vmem:[%s1 + $0x54] sm:$0xf]
  %v1583 = vld [vmem:[%s1 + $0x58] sm:$0xf]
  %v1584 = vld [vmem:[%s1 + $0x5c] sm:$0xf]
  %v1585 = vld [vmem:[%s1 + $0x60] sm:$0xf]
  %v1586 = vld [vmem:[%s1 + $0x64] sm:$0xf]
  %v1587 = vld [vmem:[%s1 + $0x68] sm:$0xf]
  %v1588 = vld [vmem:[%s1 + $0x6c] sm:$0xf]
  %v1589 = vld [vmem:[%s1 + $0x70] sm:$0xf]
  %v1590 = vld [vmem:[%s1 + $0x74] sm:$0xf]
  %v1591 = vld [vmem:[%s1 + $0x78] sm:$0xf]
  %v1592 = vld [vmem:[%s1 + $0x7c] sm:$0xf]
  %v1593 = vld [vmem:[%s2 + $0x3] sm:$0x1]
  %v1594 = vlaneseq
  %v1595 = vshrl.u32 %v1594, 7
  %v1596 = vsub.s32 0, %v1595
  %v1597 = vrot.slane %v1593, %v1596
  %v1600 = vunpack.c.l.b16 %v1575
  %v1601 = vunpack.c.l.b16 %v1576
  %v1602 = vrot.slane %v1601, 7
  %vm1603 = vcmask 1041409
  %v1604 = vsel %vm1603, %v1602, %v1600
  %v1605 = vpack.c.b16 %v1604, %v1604
  %v1623 = vunpack.c.l.b16 %v1577
  %v1624 = vunpack.c.l.b16 %v1578
  %v1625 = vunpack.c.l.b16 %v1579
  %v1626 = vunpack.c.l.b16 %v1580
  %v1627 = vunpack.c.l.b16 %v1581
  %v1628 = vunpack.c.l.b16 %v1582
  %v1629 = vunpack.c.l.b16 %v1583
  %v1630 = vunpack.c.l.b16 %v1584
  %v1631 = vunpack.c.l.b16 %v1585
  %v1632 = vunpack.c.l.b16 %v1586
  %v1633 = vunpack.c.l.b16 %v1587
  %v1634 = vunpack.c.l.b16 %v1588
  %v1635 = vunpack.c.l.b16 %v1589
  %v1636 = vunpack.c.l.b16 %v1590
  %v1637 = vunpack.c.l.b16 %v1591
  %v1638 = vunpack.c.l.b16 %v1592
  %v1639 = vpack.c.b16 %v1624, %v1623
  %v1640 = vpack.c.b16 %v1626, %v1625
  %v1641 = vpack.c.b16 %v1628, %v1627
  %v1642 = vpack.c.b16 %v1630, %v1629
  %v1643 = vpack.c.b16 %v1632, %v1631
  %v1644 = vpack.c.b16 %v1634, %v1633
  %v1645 = vpack.c.b16 %v1636, %v1635
  %v1646 = vpack.c.b16 %v1638, %v1637
  %1655 = vmatprep.subr.bf16.mxu0 0
  %1656 = vmatpush1.bf16.msra.mxu0 %v1646
  %1657 = vmatprep.subr.bf16.mxu0 0
  %1658 = vmatpush1.bf16.msra.mxu0 %v1645
  %1659 = vmatprep.subr.bf16.mxu0 0
  %1660 = vmatpush1.bf16.msra.mxu0 %v1644
  %1661 = vmatprep.subr.bf16.mxu0 0
  %1662 = vmatpush1.bf16.msra.mxu0 %v1643
  %1663 = vmatprep.subr.bf16.mxu0 0
  %1664 = vmatpush1.bf16.msra.mxu0 %v1642
  %1665 = vmatprep.subr.bf16.mxu0 0
  %1666 = vmatpush1.bf16.msra.mxu0 %v1641
  %1667 = vmatprep.subr.bf16.mxu0 0
  %1668 = vmatpush1.bf16.msra.mxu0 %v1640
  %1669 = vmatprep.subr.bf16.mxu0 0
  %1670 = vmatpush1.bf16.msra.mxu0 %v1639
  %1671 = vmatprep.subr.bf16.mxu0 0
  %1672 = vmatpush2.bf16.msra.mxu0 0
  %1673 = vmatprep.subr.bf16.mxu0 0
  %1674 = vmatpush2.bf16.msra.mxu0 0
  %1675 = vmatprep.subr.bf16.mxu0 0
  %1676 = vmatpush2.bf16.msra.mxu0 0
  %1677 = vmatprep.subr.bf16.mxu0 0
  %1678 = vmatpush2.bf16.msra.mxu0 0
  %1679 = vmatprep.subr.bf16.mxu0 0
  %1680 = vmatpush2.bf16.msra.mxu0 0
  %1681 = vmatprep.subr.bf16.mxu0 0
  %1682 = vmatpush2.bf16.msra.mxu0 0
  %1683 = vmatprep.subr.bf16.mxu0 0
  %1684 = vmatpush2.bf16.msra.mxu0 0
  %1685 = vmatprep.subr.bf16.mxu0 0
  %1686 = vmatpush2.bf16.msra.mxu0 0
  %1687 = vmatprep.mubr.bf16.mxu0 0
  %1688 = vmatmul.mubr.bf16.gmra.mxu0 %v1605
  %v1689 = vpop.f32.mrf.mxu0
  %v1690 = vadd.f32 %v1597, %v1689
  %v1691 = vpop.f32.mrf.mxu0
  %v1692 = vpop.f32.mrf.mxu0
  %v1693 = vpop.f32.mrf.mxu0
  %1694 = vdwg.mxu0
  %v1695 = vmul.f32 %v1690, %v1690
  %v1696 = vmul.f32 %v1690, %v1695
  %v1697 = vmul.f32 %v1696, 0.044715
  %v1698 = vadd.f32 %v1690, %v1697
  %v1699 = vmul.f32 %v1698, 0.7978846
  %v1700 = vtanh.pop %v1699
  %v1701 = vadd.f32 %v1700, 1.0
  %v1702 = vmul.f32 %v1701, 0.5
  %v1703 = vmul.f32 %v1690, %v1702
  %v1704 = vpack.c.bf16 %v1703, %v1703
  %v1705 = vld [vmem:[%s1 + $0x80] sm:$0xf]
  %v1706 = vld [vmem:[%s1 + $0x84] sm:$0xf]
  %v1707 = vld [vmem:[%s1 + $0x88] sm:$0xf]
  %v1708 = vld [vmem:[%s1 + $0x8c] sm:$0xf]
  %v1709 = vld [vmem:[%s1 + $0x90] sm:$0xf]
  %v1710 = vld [vmem:[%s1 + $0x94] sm:$0xf]
  %v1711 = vld [vmem:[%s1 + $0x98] sm:$0xf]
  %v1712 = vld [vmem:[%s1 + $0x9c] sm:$0xf]
  %v1713 = vld [vmem:[%s1 + $0xa0] sm:$0xf]
  %v1714 = vld [vmem:[%s1 + $0xa4] sm:$0xf]
  %v1715 = vld [vmem:[%s1 + $0xa8] sm:$0xf]
  %v1716 = vld [vmem:[%s1 + $0xac] sm:$0xf]
  %v1717 = vld [vmem:[%s1 + $0xb0] sm:$0xf]
  %v1718 = vld [vmem:[%s1 + $0xb4] sm:$0xf]
  %v1719 = vld [vmem:[%s1 + $0xb8] sm:$0xf]
  %v1720 = vld [vmem:[%s1 + $0xbc] sm:$0xf]
  %v1721 = vld [vmem:[%s2 + $0x4] sm:$0x1]
  %v1722 = vlaneseq
  %v1723 = vshrl.u32 %v1722, 7
  %v1724 = vsub.s32 0, %v1723
  %v1725 = vrot.slane %v1721, %v1724
  %v1742 = vunpack.c.l.b16 %v1705
  %v1743 = vunpack.c.l.b16 %v1706
  %v1744 = vunpack.c.l.b16 %v1707
  %v1745 = vunpack.c.l.b16 %v1708
  %v1746 = vunpack.c.l.b16 %v1709
  %v1747 = vunpack.c.l.b16 %v1710
  %v1748 = vunpack.c.l.b16 %v1711
  %v1749 = vunpack.c.l.b16 %v1712
  %v1750 = vunpack.c.l.b16 %v1713
  %v1751 = vunpack.c.l.b16 %v1714
  %v1752 = vunpack.c.l.b16 %v1715
  %v1753 = vunpack.c.l.b16 %v1716
  %v1754 = vunpack.c.l.b16 %v1717
  %v1755 = vunpack.c.l.b16 %v1718
  %v1756 = vunpack.c.l.b16 %v1719
  %v1757 = vunpack.c.l.b16 %v1720
  %v1758 = vpack.c.b16 %v1743, %v1742
  %v1759 = vpack.c.b16 %v1745, %v1744
  %v1760 = vpack.c.b16 %v1747, %v1746
  %v1761 = vpack.c.b16 %v1749, %v1748
  %v1762 = vpack.c.b16 %v1751, %v1750
  %v1763 = vpack.c.b16 %v1753, %v1752
  %v1764 = vpack.c.b16 %v1755, %v1754
  %v1765 = vpack.c.b16 %v1757, %v1756
  %1774 = vmatprep.subr.bf16.mxu0 0
  %1775 = vmatpush1.bf16.msra.mxu0 %v1765
  %1776 = vmatprep.subr.bf16.mxu0 0
  %1777 = vmatpush1.bf16.msra.mxu0 %v1764
  %1778 = vmatprep.subr.bf16.mxu0 0
  %1779 = vmatpush1.bf16.msra.mxu0 %v1763
  %1780 = vmatprep.subr.bf16.mxu0 0
  %1781 = vmatpush1.bf16.msra.mxu0 %v1762
  %1782 = vmatprep.subr.bf16.mxu0 0
  %1783 = vmatpush1.bf16.msra.mxu0 %v1761
  %1784 = vmatprep.subr.bf16.mxu0 0
  %1785 = vmatpush1.bf16.msra.mxu0 %v1760
  %1786 = vmatprep.subr.bf16.mxu0 0
  %1787 = vmatpush1.bf16.msra.mxu0 %v1759
  %1788 = vmatprep.subr.bf16.mxu0 0
  %1789 = vmatpush1.bf16.msra.mxu0 %v1758
  %1790 = vmatprep.subr.bf16.mxu0 0
  %1791 = vmatpush2.bf16.msra.mxu0 0
  %1792 = vmatprep.subr.bf16.mxu0 0
  %1793 = vmatpush2.bf16.msra.mxu0 0
  %1794 = vmatprep.subr.bf16.mxu0 0
  %1795 = vmatpush2.bf16.msra.mxu0 0
  %1796 = vmatprep.subr.bf16.mxu0 0
  %1797 = vmatpush2.bf16.msra.mxu0 0
  %1798 = vmatprep.subr.bf16.mxu0 0
  %1799 = vmatpush2.bf16.msra.mxu0 0
  %1800 = vmatprep.subr.bf16.mxu0 0
  %1801 = vmatpush2.bf16.msra.mxu0 0
  %1802 = vmatprep.subr.bf16.mxu0 0
  %1803 = vmatpush2.bf16.msra.mxu0 0
  %1804 = vmatprep.subr.bf16.mxu0 0
  %1805 = vmatpush2.bf16.msra.mxu0 0
  %1806 = vmatprep.mubr.bf16.mxu0 0
  %1807 = vmatmul.mubr.bf16.gmra.mxu0 %v1704
  %v1808 = vpop.f32.mrf.mxu0
  %v1809 = vadd.f32 %v1725, %v1808
  %v1810 = vpop.f32.mrf.mxu0
  %v1811 = vpop.f32.mrf.mxu0
  %v1812 = vpop.f32.mrf.mxu0
  %1813 = vdwg.mxu0
  %vm1814 = vcmask 9216
  %v1815 = vsel %vm1814, %v1809, -inf
  %1816 = vmax.xlane.f32.xlu0 %v1815
  %v1817 = vpop.xlane.xlu0 %1816
  %v1818 = vsub.f32 %v1809, %v1817
  %v1819 = vmul.f32 %v1818, 1.442695
  %v1820 = vpow.pop %v1819
  %v1821 = vsel %vm1814, %v1820, 0.0
  %1822 = vadd.xlane.f32.xlu0 %v1821
  %v1823 = vpop.xlane.xlu0 %1822
  %v1824 = vlog2.pop %v1823
  %v1825 = vmul.f32 %v1824, 0.6931472
  %v1826 = vadd.f32 %v1825, %v1817
  %v1827 = vmul.f32 %v21, %v1809
  %v1828 = vsel %vm1814, %v1827, 0.0
  %1829 = vadd.xlane.f32.xlu0 %v1828
  %v1830 = vpop.xlane.xlu0 %1829
  %v1831 = vsub.f32 %v1826, %v1830
  %vm1832 = vcmask 1024
  %v1833 = vsel %vm1832, %v1831, 0.0
  %1834 = vadd.xlane.f32.xlu0 %v1833
  %v1835 = vpop.xlane.xlu0 %1834
  %v1836 = vrot.slane %v1835, 4
  %v1837 = vadd.f32 %v1835, %v1836
  %v1838 = vrot.slane %v1837, 2
  %v1839 = vadd.f32 %v1837, %v1838
  %v1840 = vrot.slane %v1839, 1
  %v1841 = vadd.f32 %v1839, %v1840
  %s1842 = vtos %v1841
  %s1843 = smul.f32 %s1842, 0.5
  %v1844 = vstv %s1843
  %vm1845 = vcmask 1041408
  %v1846 = vsel %vm1845, %v1809, %v1844
  %vm1847 = vcmask 1042432
  %v1848 = vsel %vm1847, %v1846, 0.0
  %1849 = vst [vmem:[%s3] sm:$0xff] %v1848
  // Predicated region
  $region14: #{ipu_model_forward.1} parent=0 // pred_check
    _
  $region15: #{ipu_model_forward.1} parent=0 // pred_check_branch
    %1851 = sbr.rel (0) target = $region17
  $region16: #{ipu_model_forward.1} parent=0 // pred_region
    _
  $region17: #{ipu_model_forward.1} parent=0 // pred_fallthru
    _
  // Predicated region
  $region18: #{ipu_model_forward.1} parent=0 // pred_check
    _
  $region19: #{ipu_model_forward.1} parent=0 // pred_check_branch
    %1853 = sbr.rel (0) target = $region21
  $region20: #{ipu_model_forward.1} parent=0 // pred_region
    _
  $region21: #{ipu_model_forward.1} parent=0 // pred_fallthru
    _

</llo_original>
